<compile_context>
chip_gen: v7x
topology: tpu7x:2x2x1
jax: 0.10.0
libtpu: 0.0.40
codegen_flags: <defaults>
</compile_context>

<pallas_src>
import math
from functools import partial

import numpy as np
import jax
import jax.numpy as jnp
from jax import lax
from jax.experimental import pallas as pl
from jax.experimental.pallas import tpu as pltpu

# Small synthetic sizes consistent with the module's forward
EMBED_DIM = 32      # module default 300
HIDDEN_DIM = 16     # module default 256
ATTENTION_DIM = 32  # module default 256
BATCH = 2
SEQ = 8             # == max(sent_len)


# ----------------------------------------------------------------------------
# Fused kernel: bidirectional GRU (packed-sequence semantics) + attention pool
# ----------------------------------------------------------------------------
def fused_gru_attn_kernel(x_ref, lens_ref,
                          wih_ref, whh_f_ref, whh_b_ref,
                          bih_ref, bhn_ref, wqk_ref, bqk_ref,
                          o_ref, h_scr, gi_scr,
                          *, hidden, attn_dim, scale):
    T, Bt, E = x_ref.shape
    H, A = hidden, attn_dim
    H3 = 3 * H

    # ---- hoisted input projection (both directions): one [T*Bt, E] @ [E, 6H] matmul.
    #      r/z halves of b_hh are already folded into bih_ref by the wrapper.
    gi = jnp.dot(x_ref[...].reshape(T * Bt, E), wih_ref[...],
                 preferred_element_type=jnp.float32) + bih_ref[...]
    gi_scr[...] = gi.reshape(T, Bt, 6 * H)

    lens = lens_ref[...]                                   # [Bt, 1] int32
    whh_f = whh_f_ref[...]
    whh_b = whh_b_ref[...]
    # hoisted broadcasts of the remaining recurrent (n-gate) biases
    bhn_f = jnp.broadcast_to(bhn_ref[:, 0:H], (Bt, H))
    bhn_b = jnp.broadcast_to(bhn_ref[:, H:2 * H], (Bt, H))
    zeros = jnp.zeros((Bt, H), jnp.float32)

    def step(s, carry):
        h_f, h_b = carry
        tb = T - 1 - s                                     # reverse time index

        gi_f = gi_scr[s][:, 0:H3]                          # [Bt, 3H] fwd gates
        gi_b = gi_scr[tb][:, H3:2 * H3]                    # [Bt, 3H] bwd gates

        gh_f = jnp.dot(h_f, whh_f, preferred_element_type=jnp.float32)
        gh_b = jnp.dot(h_b, whh_b, preferred_element_type=jnp.float32)

        # PyTorch gate order r, z, n:  n = tanh(gi_n + r * (gh_n + b_hn))
        r_f = jax.nn.sigmoid(gi_f[:, 0:H] + gh_f[:, 0:H])
        z_f = jax.nn.sigmoid(gi_f[:, H:2 * H] + gh_f[:, H:2 * H])
        n_f = jnp.tanh(gi_f[:, 2 * H:H3] + r_f * (gh_f[:, 2 * H:H3] + bhn_f))
        hf_new = (1.0 - z_f) * n_f + z_f * h_f

        r_b = jax.nn.sigmoid(gi_b[:, 0:H] + gh_b[:, 0:H])
        z_b = jax.nn.sigmoid(gi_b[:, H:2 * H] + gh_b[:, H:2 * H])
        n_b = jnp.tanh(gi_b[:, 2 * H:H3] + r_b * (gh_b[:, 2 * H:H3] + bhn_b))
        hb_new = (1.0 - z_b) * n_b + z_b * h_b

        valid_f = lens > s                                 # [Bt, 1]
        valid_b = lens > tb

        # packed-sequence semantics: zero output / frozen state past each length
        h_scr[s, :, 0:H] = jnp.where(valid_f, hf_new, 0.0)
        h_scr[tb, :, H:2 * H] = jnp.where(valid_b, hb_new, 0.0)

        return (jnp.where(valid_f, hf_new, h_f),
                jnp.where(valid_b, hb_new, h_b))

    lax.fori_loop(0, T, step, (zeros, zeros))

    # ---- attention-pooling epilogue: everything stays in VMEM -------------------
    h_bt = jnp.transpose(h_scr[...], (1, 0, 2))            # [Bt, T, 2H]

    # merged Q|K projection: one matmul + one tanh
    qk = jnp.tanh(jnp.dot(h_bt.reshape(Bt * T, 2 * H), wqk_ref[...],
                          preferred_element_type=jnp.float32) + bqk_ref[...])
    qk = qk.reshape(Bt, T, 2 * A)
    q = qk[:, :, 0:A]
    k = qk[:, :, A:2 * A]

    p = jnp.einsum("bqa,bka->bqk", q, k,
                   preferred_element_type=jnp.float32) * scale      # [Bt, T, T]

    lens3 = lens.reshape(Bt, 1, 1)
    rows = lax.broadcasted_iota(jnp.int32, (Bt, T, T), 1)
    cols = lax.broadcasted_iota(jnp.int32, (Bt, T, T), 2)
    p = jnp.where((rows < lens3) & (cols < lens3), p, -1e10)

    # softmax along the key axis (dim=2); exact divide for parity with F.softmax
    m = jnp.max(p, axis=-1, keepdims=True)
    e = jnp.exp(p - m)
    attn = e / jnp.sum(e, axis=-1, keepdims=True)

    # pooled = sum_q (attn @ h)  ==  (1^T attn) @ h   -- T-fold FLOP reduction
    colsum = jnp.sum(attn, axis=1)                         # [Bt, T]
    o_ref[...] = jnp.sum(colsum[:, :, None] * h_bt, axis=1)    # [Bt, 2H] dense store


# ----------------------------------------------------------------------------
# Wrapper (== SentenceSelfAttention.forward; fc_dropout is never used in forward)
# ----------------------------------------------------------------------------
def sentence_self_attention_forward(params, sents_tbe, sent_len, *, batch_tile=8):
    T, B, E = sents_tbe.shape
    H = params["whh_f"].shape[0]
    A = params["wq"].shape[1]
    scale = 1.0 / math.sqrt(params["embed_dim"])

    # Batch tile: multiple of 8 (sublane-aligned reshapes / dense stores).
    # TODO(synk): size per generation at production shapes (~16-24 on v7x, 48-64 on v6e).
    Bt = max(8, (batch_tile // 8) * 8)
    Bpad = ((B + Bt - 1) // Bt) * Bt

    x = sents_tbe
    lens = sent_len.astype(jnp.int32).reshape(B, 1)
    if Bpad != B:
        x = jnp.concatenate([x, jnp.zeros((T, Bpad - B, E), x.dtype)], axis=1)
        lens = jnp.concatenate([lens, jnp.full((Bpad - B, 1), T, jnp.int32)], axis=0)

    # GRU weights, both directions concatenated on the gate axis (r|z|n per direction)
    wih_cat = jnp.concatenate([params["wih_f"], params["wih_b"]], axis=1)    # [E, 6H]

    def fold(bih, bhh):   # fold r/z recurrent biases into the hoisted input bias
        return jnp.concatenate([bih[:, 0:2 * H] + bhh[:, 0:2 * H],
                                bih[:, 2 * H:3 * H]], axis=1)

    bih_fold = jnp.concatenate([fold(params["bih_f"], params["bhh_f"]),
                                fold(params["bih_b"], params["bhh_b"])], axis=1)   # [1, 6H]
    bhn_cat = jnp.concatenate([params["bhh_f"][:, 2 * H:3 * H],
                               params["bhh_b"][:, 2 * H:3 * H]], axis=1)           # [1, 2H]

    # merged Q|K attention projection
    wqk = jnp.concatenate([params["wq"], params["wk"]], axis=1)              # [2H, 2A]
    bqk = jnp.concatenate([params["bq"], params["bk"]], axis=1)              # [1, 2A]

    out = pl.pallas_call(
        partial(fused_gru_attn_kernel, hidden=H, attn_dim=A, scale=scale),
        out_shape=jax.ShapeDtypeStruct((Bpad, 2 * H), jnp.float32),
        grid_spec=pltpu.PrefetchScalarGridSpec(
            num_scalar_prefetch=0,
            grid=(Bpad // Bt,),
            in_specs=[
                pl.BlockSpec((T, Bt, E), lambda b: (0, b, 0)),        # x slab
                pl.BlockSpec((Bt, 1), lambda b: (b, 0)),              # lengths
                pl.BlockSpec((E, 6 * H), lambda b: (0, 0)),           # W_ih (both dirs)
                pl.BlockSpec((H, 3 * H), lambda b: (0, 0)),           # W_hh fwd
                pl.BlockSpec((H, 3 * H), lambda b: (0, 0)),           # W_hh bwd
                pl.BlockSpec((1, 6 * H), lambda b: (0, 0)),           # folded input bias
                pl.BlockSpec((1, 2 * H), lambda b: (0, 0)),           # b_hn fwd|bwd
                pl.BlockSpec((2 * H, 2 * A), lambda b: (0, 0)),       # W_q | W_k
                pl.BlockSpec((1, 2 * A), lambda b: (0, 0)),           # b_q | b_k
            ],
            out_specs=pl.BlockSpec((Bt, 2 * H), lambda b: (b, 0)),
            scratch_shapes=[
                pltpu.VMEM((T, Bt, 2 * H), jnp.float32),   # GRU outputs, fwd|bwd lanes
                pltpu.VMEM((T, Bt, 6 * H), jnp.float32),   # hoisted input-gate proj
            ],
        ),
        compiler_params=pltpu.CompilerParams(
            dimension_semantics=("parallel",),
            vmem_limit_bytes=64 * 1024 * 1024,
        ),
    )(x, lens, wih_cat, params["whh_f"], params["whh_b"],
      bih_fold, bhn_cat, wqk, bqk)

    return out[:B]                                          # [B, 2H]


# ----------------------------------------------------------------------------
# Deterministic parameter init (shapes per nn.GRU / nn.Linear in __init__)
# ----------------------------------------------------------------------------
def init_params(key, embed_dim, hidden_dim, attention_dim):
    ks = jax.random.split(key, 12)
    s = 1.0 / math.sqrt(hidden_dim)
    u = lambda k, shape: jax.random.uniform(k, shape, jnp.float32, -s, s)
    return dict(
        embed_dim=embed_dim,
        # GRU forward direction (weights stored transposed: [in, 3H], gate order r,z,n)
        wih_f=u(ks[0], (embed_dim, 3 * hidden_dim)),
        whh_f=u(ks[1], (hidden_dim, 3 * hidden_dim)),
        bih_f=u(ks[2], (1, 3 * hidden_dim)),
        bhh_f=u(ks[3], (1, 3 * hidden_dim)),
        # GRU reverse direction
        wih_b=u(ks[4], (embed_dim, 3 * hidden_dim)),
        whh_b=u(ks[5], (hidden_dim, 3 * hidden_dim)),
        bih_b=u(ks[6], (1, 3 * hidden_dim)),
        bhh_b=u(ks[7], (1, 3 * hidden_dim)),
        # query / key attention Linear layers ([2H, A] + bias)
        wq=u(ks[8], (2 * hidden_dim, attention_dim)),
        bq=u(ks[9], (1, attention_dim)),
        wk=u(ks[10], (2 * hidden_dim, attention_dim)),
        bk=u(ks[11], (1, attention_dim)),
    )


# ----------------------------------------------------------------------------
# Pure-JAX reference (same semantics as the PyTorch module) for verification
# ----------------------------------------------------------------------------
def _gru_cell(x_t, h, w_ih, w_hh, b_ih, b_hh, hidden):
    gi = jnp.dot(x_t, w_ih) + b_ih
    gh = jnp.dot(h, w_hh) + b_hh
    r = jax.nn.sigmoid(gi[:, 0:hidden] + gh[:, 0:hidden])
    z = jax.nn.sigmoid(gi[:, hidden:2 * hidden] + gh[:, hidden:2 * hidden])
    n = jnp.tanh(gi[:, 2 * hidden:3 * hidden] + r * gh[:, 2 * hidden:3 * hidden])
    return (1.0 - z) * n + z * h


def reference_forward(params, x_tbe, sent_len, embed_dim, hidden_dim):
    T, B, _ = x_tbe.shape
    H = hidden_dim
    lens_col = sent_len.reshape(B, 1)

    def run_dir(order, wih, whh, bih, bhh):
        h = jnp.zeros((B, H), jnp.float32)
        outs = [None] * T
        for t in order:
            h_new = _gru_cell(x_tbe[t], h, wih, whh, bih, bhh, H)
            valid = lens_col > t
            outs[t] = jnp.where(valid, h_new, 0.0)
            h = jnp.where(valid, h_new, h)
        return jnp.stack(outs, axis=0)  # [T, B, H]

    out_f = run_dir(range(T), params["wih_f"], params["whh_f"], params["bih_f"], params["bhh_f"])
    out_b = run_dir(range(T - 1, -1, -1), params["wih_b"], params["whh_b"], params["bih_b"], params["bhh_b"])
    outputs = jnp.transpose(jnp.concatenate([out_f, out_b], axis=-1), (1, 0, 2))  # [B, T, 2H]

    q = jnp.tanh(outputs @ params["wq"] + params["bq"])
    k = jnp.tanh(outputs @ params["wk"] + params["bk"])
    P = jnp.einsum("bqa,bka->bqk", q, k) * (1.0 / math.sqrt(embed_dim))
    rows = jnp.arange(T)[None, :, None]
    cols = jnp.arange(T)[None, None, :]
    L = sent_len[:, None, None]
    mask = (rows < L) & (cols < L)
    P = jnp.where(mask, P, -1e10)
    m = P.max(axis=-1, keepdims=True)
    e = jnp.exp(P - m)
    attn = e / e.sum(axis=-1, keepdims=True)
    final = jnp.einsum("bqk,bkd->bqd", attn, outputs)
    return final.sum(axis=1)


if __name__ == "__main__":
    key = jax.random.PRNGKey(0)
    kp, kx = jax.random.split(key)
    params = init_params(kp, EMBED_DIM, HIDDEN_DIM, ATTENTION_DIM)

    sents = jax.random.normal(kx, (SEQ, BATCH, EMBED_DIM), jnp.float32)   # [T, B, E]
    sent_len = jnp.array([SEQ, 5], dtype=jnp.int32)                       # max == T

    out = sentence_self_attention_forward(params, sents, sent_len)
    out = jax.block_until_ready(out)
    assert out.shape == (BATCH, 2 * HIDDEN_DIM)

    ref = reference_forward(params, sents, sent_len, EMBED_DIM, HIDDEN_DIM)
    np.testing.assert_allclose(np.asarray(out), np.asarray(ref), rtol=3e-3, atol=3e-3)
    print("KERNEL_OK")
</pallas_src>

<mosaic_0001>
module attributes {stable_mosaic.version = 11 : i64} {
  func.func @fused_gru_attn_kernel(%arg0: i32, %arg1: memref<8x8x32xf32, #tpu.memory_space<vmem>>, %arg2: memref<8x1xi32, #tpu.memory_space<vmem>>, %arg3: memref<32x96xf32, #tpu.memory_space<vmem>>, %arg4: memref<16x48xf32, #tpu.memory_space<vmem>>, %arg5: memref<16x48xf32, #tpu.memory_space<vmem>>, %arg6: memref<1x96xf32, #tpu.memory_space<vmem>>, %arg7: memref<1x32xf32, #tpu.memory_space<vmem>>, %arg8: memref<32x64xf32, #tpu.memory_space<vmem>>, %arg9: memref<1x64xf32, #tpu.memory_space<vmem>>, %arg10: memref<8x32xf32, #tpu.memory_space<vmem>>, %arg11: memref<8x8x32xf32, #tpu.memory_space<vmem>>, %arg12: memref<8x8x96xf32, #tpu.memory_space<vmem>>) attributes {dimension_semantics = [#tpu.dimension_semantics<parallel>], iteration_bounds = array<i64: 1>, scalar_prefetch = 0 : i64, scratch_operands = 2 : i64, tpu.core_type = #tpu.core_type<tc>, window_params = [{transform_indices = @transform_0, window_bounds = array<i64: 8, 8, 32>}, {transform_indices = @transform_1, window_bounds = array<i64: 8, 1>}, {pipeline_mode = #tpu.pipeline_mode<synchronous>, transform_indices = @transform_2, window_bounds = array<i64: 32, 96>}, {pipeline_mode = #tpu.pipeline_mode<synchronous>, transform_indices = @transform_3, window_bounds = array<i64: 16, 48>}, {pipeline_mode = #tpu.pipeline_mode<synchronous>, transform_indices = @transform_4, window_bounds = array<i64: 16, 48>}, {pipeline_mode = #tpu.pipeline_mode<synchronous>, transform_indices = @transform_5, window_bounds = array<i64: 1, 96>}, {pipeline_mode = #tpu.pipeline_mode<synchronous>, transform_indices = @transform_6, window_bounds = array<i64: 1, 32>}, {pipeline_mode = #tpu.pipeline_mode<synchronous>, transform_indices = @transform_7, window_bounds = array<i64: 32, 64>}, {pipeline_mode = #tpu.pipeline_mode<synchronous>, transform_indices = @transform_8, window_bounds = array<i64: 1, 64>}, {transform_indices = @transform_9, window_bounds = array<i64: 8, 32>}]} {
    %c0 = arith.constant 0 : index
    %c0_0 = arith.constant 0 : index
    %c0_1 = arith.constant 0 : index
    %0 = vector.load %arg1[%c0, %c0_0, %c0_1] : memref<8x8x32xf32, #tpu.memory_space<vmem>>, vector<8x8x32xf32>
    %1 = vector.shape_cast %0 : vector<8x8x32xf32> to vector<64x32xf32>
    %c0_2 = arith.constant 0 : index
    %c0_3 = arith.constant 0 : index
    %2 = vector.load %arg3[%c0_2, %c0_3] : memref<32x96xf32, #tpu.memory_space<vmem>>, vector<32x96xf32>
    %cst = arith.constant dense<0.000000e+00> : vector<64x96xf32>
    %3 = tpu.matmul %1, %2, %cst {dimension_numbers = #tpu.dot_dimension_numbers<[1], [0], [0], [1], [0, 0, 1, 1], [], []>} : vector<64x32xf32>, vector<32x96xf32>, vector<64x96xf32> -> vector<64x96xf32>
    %c0_4 = arith.constant 0 : index
    %c0_5 = arith.constant 0 : index
    %4 = vector.load %arg6[%c0_4, %c0_5] : memref<1x96xf32, #tpu.memory_space<vmem>>, vector<1x96xf32>
    %5 = vector.broadcast %4 : vector<1x96xf32> to vector<64x96xf32>
    %6 = arith.addf %3, %5 : vector<64x96xf32>
    %7 = vector.shape_cast %6 : vector<64x96xf32> to vector<8x8x96xf32>
    %c0_6 = arith.constant 0 : index
    %c0_7 = arith.constant 0 : index
    %c0_8 = arith.constant 0 : index
    %8 = vector.load %arg12[%c0_6, %c0_7, %c0_8] : memref<8x8x96xf32, #tpu.memory_space<vmem>>, vector<8x8x96xf32>
    tpu.vector_store %arg12[%c0_6, %c0_7, %c0_8], %7 {strides = array<i32>} : memref<8x8x96xf32, #tpu.memory_space<vmem>>, vector<8x8x96xf32>,
    %c0_9 = arith.constant 0 : index
    %c0_10 = arith.constant 0 : index
    %9 = vector.load %arg2[%c0_9, %c0_10] : memref<8x1xi32, #tpu.memory_space<vmem>>, vector<8x1xi32>
    %c0_11 = arith.constant 0 : index
    %c0_12 = arith.constant 0 : index
    %10 = vector.load %arg4[%c0_11, %c0_12] : memref<16x48xf32, #tpu.memory_space<vmem>>, vector<16x48xf32>
    %c0_13 = arith.constant 0 : index
    %c0_14 = arith.constant 0 : index
    %11 = vector.load %arg5[%c0_13, %c0_14] : memref<16x48xf32, #tpu.memory_space<vmem>>, vector<16x48xf32>
    %c0_15 = arith.constant 0 : index
    %c0_16 = arith.constant 0 : index
    %12 = vector.load %arg7[%c0_15, %c0_16] : memref<1x32xf32, #tpu.memory_space<vmem>>, vector<1x16xf32>
    %13 = vector.shape_cast %12 : vector<1x16xf32> to vector<1x16xf32>
    %14 = vector.broadcast %13 : vector<1x16xf32> to vector<8x16xf32>
    %c0_17 = arith.constant 0 : index
    %c16 = arith.constant 16 : index
    %15 = vector.load %arg7[%c0_17, %c16] : memref<1x32xf32, #tpu.memory_space<vmem>>, vector<1x16xf32>
    %16 = vector.shape_cast %15 : vector<1x16xf32> to vector<1x16xf32>
    %17 = vector.broadcast %16 : vector<1x16xf32> to vector<8x16xf32>
    %cst_18 = arith.constant 0.000000e+00 : f32
    %18 = vector.broadcast %cst_18 : f32 to vector<8x16xf32>
    %c0_i32 = arith.constant 0 : i32
    %c8_i32 = arith.constant 8 : i32
    %19 = arith.addi %c0_i32, %c8_i32 : i32
    %c1_i32 = arith.constant 1 : i32
    %20:2 = scf.for %arg13 = %c0_i32 to %19 step %c1_i32 iter_args(%arg14 = %18, %arg15 = %18) -> (vector<8x16xf32>, vector<8x16xf32>)  : i32 {
      %c7_i32 = arith.constant 7 : i32
      %61 = arith.subi %c7_i32, %arg13 : i32
      %62 = arith.index_cast %arg13 : i32 to index
      %c0_37 = arith.constant 0 : index
      %c0_38 = arith.constant 0 : index
      %63 = vector.load %arg12[%62, %c0_37, %c0_38] : memref<8x8x96xf32, #tpu.memory_space<vmem>>, vector<1x8x96xf32>
      %64 = vector.shape_cast %63 : vector<1x8x96xf32> to vector<8x96xf32>
      %65 = vector.extract_strided_slice %64 {offsets = [0, 0], sizes = [8, 48], strides = [1, 1]} : vector<8x96xf32> to vector<8x48xf32>
      %66 = arith.index_cast %61 : i32 to index
      %c0_39 = arith.constant 0 : index
      %c0_40 = arith.constant 0 : index
      %67 = vector.load %arg12[%66, %c0_39, %c0_40] : memref<8x8x96xf32, #tpu.memory_space<vmem>>, vector<1x8x96xf32>
      %68 = vector.shape_cast %67 : vector<1x8x96xf32> to vector<8x96xf32>
      %69 = vector.extract_strided_slice %68 {offsets = [0, 48], sizes = [8, 48], strides = [1, 1]} : vector<8x96xf32> to vector<8x48xf32>
      %cst_41 = arith.constant dense<0.000000e+00> : vector<8x48xf32>
      %70 = tpu.matmul %arg14, %10, %cst_41 {dimension_numbers = #tpu.dot_dimension_numbers<[1], [0], [0], [1], [0, 0, 1, 1], [], []>} : vector<8x16xf32>, vector<16x48xf32>, vector<8x48xf32> -> vector<8x48xf32>
      %cst_42 = arith.constant dense<0.000000e+00> : vector<8x48xf32>
      %71 = tpu.matmul %arg15, %11, %cst_42 {dimension_numbers = #tpu.dot_dimension_numbers<[1], [0], [0], [1], [0, 0, 1, 1], [], []>} : vector<8x16xf32>, vector<16x48xf32>, vector<8x48xf32> -> vector<8x48xf32>
      %72 = vector.extract_strided_slice %65 {offsets = [0, 0], sizes = [8, 16], strides = [1, 1]} : vector<8x48xf32> to vector<8x16xf32>
      %73 = vector.extract_strided_slice %70 {offsets = [0, 0], sizes = [8, 16], strides = [1, 1]} : vector<8x48xf32> to vector<8x16xf32>
      %74 = arith.addf %72, %73 : vector<8x16xf32>
      %75 = arith.negf %74 : vector<8x16xf32>
      %76 = math.exp %75 : vector<8x16xf32>
      %cst_43 = arith.constant 1.000000e+00 : f32
      %77 = vector.broadcast %cst_43 : f32 to vector<8x16xf32>
      %78 = arith.addf %77, %76 : vector<8x16xf32>
      %79 = arith.divf %77, %78 : vector<8x16xf32>
      %80 = vector.extract_strided_slice %65 {offsets = [0, 16], sizes = [8, 16], strides = [1, 1]} : vector<8x48xf32> to vector<8x16xf32>
      %81 = vector.extract_strided_slice %70 {offsets = [0, 16], sizes = [8, 16], strides = [1, 1]} : vector<8x48xf32> to vector<8x16xf32>
      %82 = arith.addf %80, %81 : vector<8x16xf32>
      %83 = arith.negf %82 : vector<8x16xf32>
      %84 = math.exp %83 : vector<8x16xf32>
      %cst_44 = arith.constant 1.000000e+00 : f32
      %85 = vector.broadcast %cst_44 : f32 to vector<8x16xf32>
      %86 = arith.addf %85, %84 : vector<8x16xf32>
      %87 = arith.divf %85, %86 : vector<8x16xf32>
      %88 = vector.extract_strided_slice %65 {offsets = [0, 32], sizes = [8, 16], strides = [1, 1]} : vector<8x48xf32> to vector<8x16xf32>
      %89 = vector.extract_strided_slice %70 {offsets = [0, 32], sizes = [8, 16], strides = [1, 1]} : vector<8x48xf32> to vector<8x16xf32>
      %90 = arith.addf %89, %14 : vector<8x16xf32>
      %91 = arith.mulf %79, %90 : vector<8x16xf32>
      %92 = arith.addf %88, %91 : vector<8x16xf32>
      %93 = math.tanh %92 : vector<8x16xf32>
      %cst_45 = arith.constant 1.000000e+00 : f32
      %94 = vector.broadcast %cst_45 : f32 to vector<8x16xf32>
      %95 = arith.subf %94, %87 : vector<8x16xf32>
      %96 = arith.mulf %95, %93 : vector<8x16xf32>
      %97 = arith.mulf %87, %arg14 : vector<8x16xf32>
      %98 = arith.addf %96, %97 : vector<8x16xf32>
      %99 = vector.extract_strided_slice %69 {offsets = [0, 0], sizes = [8, 16], strides = [1, 1]} : vector<8x48xf32> to vector<8x16xf32>
      %100 = vector.extract_strided_slice %71 {offsets = [0, 0], sizes = [8, 16], strides = [1, 1]} : vector<8x48xf32> to vector<8x16xf32>
      %101 = arith.addf %99, %100 : vector<8x16xf32>
      %102 = arith.negf %101 : vector<8x16xf32>
      %103 = math.exp %102 : vector<8x16xf32>
      %cst_46 = arith.constant 1.000000e+00 : f32
      %104 = vector.broadcast %cst_46 : f32 to vector<8x16xf32>
      %105 = arith.addf %104, %103 : vector<8x16xf32>
      %106 = arith.divf %104, %105 : vector<8x16xf32>
      %107 = vector.extract_strided_slice %69 {offsets = [0, 16], sizes = [8, 16], strides = [1, 1]} : vector<8x48xf32> to vector<8x16xf32>
      %108 = vector.extract_strided_slice %71 {offsets = [0, 16], sizes = [8, 16], strides = [1, 1]} : vector<8x48xf32> to vector<8x16xf32>
      %109 = arith.addf %107, %108 : vector<8x16xf32>
      %110 = arith.negf %109 : vector<8x16xf32>
      %111 = math.exp %110 : vector<8x16xf32>
      %cst_47 = arith.constant 1.000000e+00 : f32
      %112 = vector.broadcast %cst_47 : f32 to vector<8x16xf32>
      %113 = arith.addf %112, %111 : vector<8x16xf32>
      %114 = arith.divf %112, %113 : vector<8x16xf32>
      %115 = vector.extract_strided_slice %69 {offsets = [0, 32], sizes = [8, 16], strides = [1, 1]} : vector<8x48xf32> to vector<8x16xf32>
      %116 = vector.extract_strided_slice %71 {offsets = [0, 32], sizes = [8, 16], strides = [1, 1]} : vector<8x48xf32> to vector<8x16xf32>
      %117 = arith.addf %116, %17 : vector<8x16xf32>
      %118 = arith.mulf %106, %117 : vector<8x16xf32>
      %119 = arith.addf %115, %118 : vector<8x16xf32>
      %120 = math.tanh %119 : vector<8x16xf32>
      %cst_48 = arith.constant 1.000000e+00 : f32
      %121 = vector.broadcast %cst_48 : f32 to vector<8x16xf32>
      %122 = arith.subf %121, %114 : vector<8x16xf32>
      %123 = arith.mulf %122, %120 : vector<8x16xf32>
      %124 = arith.mulf %114, %arg15 : vector<8x16xf32>
      %125 = arith.addf %123, %124 : vector<8x16xf32>
      %126 = vector.broadcast %arg13 : i32 to vector<8x1xi32>
      %127 = arith.cmpi sgt, %9, %126 : vector<8x1xi32>
      %128 = vector.broadcast %61 : i32 to vector<8x1xi32>
      %129 = arith.cmpi sgt, %9, %128 : vector<8x1xi32>
      %cst_49 = arith.constant 0.000000e+00 : f32
      %130 = vector.shape_cast %127 : vector<8x1xi1> to vector<8x1xi1>
      %131 = vector.broadcast %130 : vector<8x1xi1> to vector<8x16xi1>
      %132 = vector.broadcast %cst_49 : f32 to vector<8x16xf32>
      %133 = arith.select %131, %98, %132 : vector<8x16xi1>, vector<8x16xf32>
      %134 = arith.index_cast %arg13 : i32 to index
      %c0_50 = arith.constant 0 : index
      %c0_51 = arith.constant 0 : index
      %135 = vector.load %arg11[%134, %c0_50, %c0_51] : memref<8x8x32xf32, #tpu.memory_space<vmem>>, vector<1x8x16xf32>
      %136 = vector.shape_cast %135 : vector<1x8x16xf32> to vector<8x16xf32>
      %137 = vector.shape_cast %133 : vector<8x16xf32> to vector<1x8x16xf32>
      tpu.vector_store %arg11[%134, %c0_50, %c0_51], %137 {strides = array<i32>} : memref<8x8x32xf32, #tpu.memory_space<vmem>>, vector<1x8x16xf32>,
      %cst_52 = arith.constant 0.000000e+00 : f32
      %138 = vector.shape_cast %129 : vector<8x1xi1> to vector<8x1xi1>
      %139 = vector.broadcast %138 : vector<8x1xi1> to vector<8x16xi1>
      %140 = vector.broadcast %cst_52 : f32 to vector<8x16xf32>
      %141 = arith.select %139, %125, %140 : vector<8x16xi1>, vector<8x16xf32>
      %142 = arith.index_cast %61 : i32 to index
      %c0_53 = arith.constant 0 : index
      %c16_54 = arith.constant 16 : index
      %143 = vector.load %arg11[%142, %c0_53, %c16_54] : memref<8x8x32xf32, #tpu.memory_space<vmem>>, vector<1x8x16xf32>
      %144 = vector.shape_cast %143 : vector<1x8x16xf32> to vector<8x16xf32>
      %145 = vector.shape_cast %141 : vector<8x16xf32> to vector<1x8x16xf32>
      tpu.vector_store %arg11[%142, %c0_53, %c16_54], %145 {strides = array<i32>} : memref<8x8x32xf32, #tpu.memory_space<vmem>>, vector<1x8x16xf32>,
      %146 = vector.shape_cast %127 : vector<8x1xi1> to vector<8x1xi1>
      %147 = vector.broadcast %146 : vector<8x1xi1> to vector<8x16xi1>
      %148 = arith.select %147, %98, %arg14 : vector<8x16xi1>, vector<8x16xf32>
      %149 = vector.shape_cast %129 : vector<8x1xi1> to vector<8x1xi1>
      %150 = vector.broadcast %149 : vector<8x1xi1> to vector<8x16xi1>
      %151 = arith.select %150, %125, %arg15 : vector<8x16xi1>, vector<8x16xf32>
      scf.yield %148, %151 : vector<8x16xf32>, vector<8x16xf32>
    }
    %c8_i32_19 = arith.constant 8 : i32
    %c0_20 = arith.constant 0 : index
    %c0_21 = arith.constant 0 : index
    %c0_22 = arith.constant 0 : index
    %21 = vector.load %arg11[%c0_20, %c0_21, %c0_22] : memref<8x8x32xf32, #tpu.memory_space<vmem>>, vector<8x8x32xf32>
    %22 = tpu.transpose %21, [1, 0, 2] : vector<8x8x32xf32> -> vector<8x8x32xf32>
    %23 = vector.shape_cast %22 : vector<8x8x32xf32> to vector<64x32xf32>
    %c0_23 = arith.constant 0 : index
    %c0_24 = arith.constant 0 : index
    %24 = vector.load %arg8[%c0_23, %c0_24] : memref<32x64xf32, #tpu.memory_space<vmem>>, vector<32x64xf32>
    %cst_25 = arith.constant dense<0.000000e+00> : vector<64x64xf32>
    %25 = tpu.matmul %23, %24, %cst_25 {dimension_numbers = #tpu.dot_dimension_numbers<[1], [0], [0], [1], [0, 0, 1, 1], [], []>} : vector<64x32xf32>, vector<32x64xf32>, vector<64x64xf32> -> vector<64x64xf32>
    %c0_26 = arith.constant 0 : index
    %c0_27 = arith.constant 0 : index
    %26 = vector.load %arg9[%c0_26, %c0_27] : memref<1x64xf32, #tpu.memory_space<vmem>>, vector<1x64xf32>
    %27 = vector.broadcast %26 : vector<1x64xf32> to vector<64x64xf32>
    %28 = arith.addf %25, %27 : vector<64x64xf32>
    %29 = math.tanh %28 : vector<64x64xf32>
    %30 = vector.shape_cast %29 : vector<64x64xf32> to vector<8x8x64xf32>
    %31 = vector.extract_strided_slice %30 {offsets = [0, 0, 0], sizes = [8, 8, 32], strides = [1, 1, 1]} : vector<8x8x64xf32> to vector<8x8x32xf32>
    %32 = vector.extract_strided_slice %30 {offsets = [0, 0, 32], sizes = [8, 8, 32], strides = [1, 1, 1]} : vector<8x8x64xf32> to vector<8x8x32xf32>
    "tpu.trace_start"() <{level = 10 : i32, message = "bqa,bka->bqk"}> : () -> ()
    %cst_28 = arith.constant dense<0.000000e+00> : vector<8x8x8xf32>
    %33 = tpu.matmul %31, %32, %cst_28 {dimension_numbers = #tpu.dot_dimension_numbers<[2], [2], [1], [1], [0, 0, 0, 1, 1, 1], [0], [0]>} : vector<8x8x32xf32>, vector<8x8x32xf32>, vector<8x8x8xf32> -> vector<8x8x8xf32>
    "tpu.trace_stop"() : () -> ()
    %cst_29 = arith.constant 0.176776692 : f32
    %34 = vector.broadcast %cst_29 : f32 to vector<8x8x8xf32>
    %35 = arith.mulf %33, %34 : vector<8x8x8xf32>
    %36 = vector.shape_cast %9 : vector<8x1xi32> to vector<8x1x1xi32>
    %37 = tpu.iota {dimensions = array<i32: 1>} : vector<8x8x8xi32>
    %38 = tpu.iota {dimensions = array<i32: 2>} : vector<8x8x8xi32>
    %39 = vector.broadcast %36 : vector<8x1x1xi32> to vector<8x8x8xi32>
    %40 = arith.cmpi slt, %37, %39 : vector<8x8x8xi32>
    %41 = vector.broadcast %36 : vector<8x1x1xi32> to vector<8x8x8xi32>
    %42 = arith.cmpi slt, %38, %41 : vector<8x8x8xi32>
    %43 = arith.andi %40, %42 : vector<8x8x8xi1>
    %cst_30 = arith.constant -1.000000e+10 : f32
    %44 = vector.broadcast %cst_30 : f32 to vector<8x8x8xf32>
    %45 = arith.select %43, %35, %44 : vector<8x8x8xi1>, vector<8x8x8xf32>
    %cst_31 = arith.constant dense<0xFF800000> : vector<8x8xf32>
    %46 = vector.multi_reduction <maximumf>, %45, %cst_31 [2] : vector<8x8x8xf32> to vector<8x8xf32>
    %47 = vector.shape_cast %46 : vector<8x8xf32> to vector<8x8x1xf32>
    %48 = vector.broadcast %47 : vector<8x8x1xf32> to vector<8x8x8xf32>
    %49 = arith.subf %45, %48 : vector<8x8x8xf32>
    %50 = math.exp %49 : vector<8x8x8xf32>
    %cst_32 = arith.constant dense<0.000000e+00> : vector<8x8xf32>
    %51 = vector.multi_reduction <add>, %50, %cst_32 [2] : vector<8x8x8xf32> to vector<8x8xf32>
    %52 = vector.shape_cast %51 : vector<8x8xf32> to vector<8x8x1xf32>
    %53 = vector.broadcast %52 : vector<8x8x1xf32> to vector<8x8x8xf32>
    %54 = arith.divf %50, %53 : vector<8x8x8xf32>
    %cst_33 = arith.constant dense<0.000000e+00> : vector<8x8xf32>
    %55 = vector.multi_reduction <add>, %54, %cst_33 [1] : vector<8x8x8xf32> to vector<8x8xf32>
    %56 = vector.shape_cast %55 : vector<8x8xf32> to vector<8x8x1xf32>
    %57 = vector.broadcast %56 : vector<8x8x1xf32> to vector<8x8x32xf32>
    %58 = arith.mulf %57, %22 : vector<8x8x32xf32>
    %cst_34 = arith.constant dense<0.000000e+00> : vector<8x32xf32>
    %59 = vector.multi_reduction <add>, %58, %cst_34 [1] : vector<8x8x32xf32> to vector<8x32xf32>
    %c0_35 = arith.constant 0 : index
    %c0_36 = arith.constant 0 : index
    %60 = vector.load %arg10[%c0_35, %c0_36] : memref<8x32xf32, #tpu.memory_space<vmem>>, vector<8x32xf32>
    tpu.vector_store %arg10[%c0_35, %c0_36], %59 {strides = array<i32>} : memref<8x32xf32, #tpu.memory_space<vmem>>, vector<8x32xf32>,
    return
  }
  func.func @transform_0(%arg0: i32) -> (i32, i32, i32) {
    %c0_i32 = arith.constant 0 : i32
    %c0_i32_0 = arith.constant 0 : i32
    %c0_i32_1 = arith.constant 0 : i32
    return %c0_i32, %arg0, %c0_i32_0 : i32, i32, i32
  }
  func.func @transform_1(%arg0: i32) -> (i32, i32) {
    %c0_i32 = arith.constant 0 : i32
    %c0_i32_0 = arith.constant 0 : i32
    return %arg0, %c0_i32 : i32, i32
  }
  func.func @transform_2(%arg0: i32) -> (i32, i32) {
    %c0_i32 = arith.constant 0 : i32
    %c0_i32_0 = arith.constant 0 : i32
    %c0_i32_1 = arith.constant 0 : i32
    return %c0_i32, %c0_i32_0 : i32, i32
  }
  func.func @transform_3(%arg0: i32) -> (i32, i32) {
    %c0_i32 = arith.constant 0 : i32
    %c0_i32_0 = arith.constant 0 : i32
    %c0_i32_1 = arith.constant 0 : i32
    return %c0_i32, %c0_i32_0 : i32, i32
  }
  func.func @transform_4(%arg0: i32) -> (i32, i32) {
    %c0_i32 = arith.constant 0 : i32
    %c0_i32_0 = arith.constant 0 : i32
    %c0_i32_1 = arith.constant 0 : i32
    return %c0_i32, %c0_i32_0 : i32, i32
  }
  func.func @transform_5(%arg0: i32) -> (i32, i32) {
    %c0_i32 = arith.constant 0 : i32
    %c0_i32_0 = arith.constant 0 : i32
    %c0_i32_1 = arith.constant 0 : i32
    return %c0_i32, %c0_i32_0 : i32, i32
  }
  func.func @transform_6(%arg0: i32) -> (i32, i32) {
    %c0_i32 = arith.constant 0 : i32
    %c0_i32_0 = arith.constant 0 : i32
    %c0_i32_1 = arith.constant 0 : i32
    return %c0_i32, %c0_i32_0 : i32, i32
  }
  func.func @transform_7(%arg0: i32) -> (i32, i32) {
    %c0_i32 = arith.constant 0 : i32
    %c0_i32_0 = arith.constant 0 : i32
    %c0_i32_1 = arith.constant 0 : i32
    return %c0_i32, %c0_i32_0 : i32, i32
  }
  func.func @transform_8(%arg0: i32) -> (i32, i32) {
    %c0_i32 = arith.constant 0 : i32
    %c0_i32_0 = arith.constant 0 : i32
    %c0_i32_1 = arith.constant 0 : i32
    return %c0_i32, %c0_i32_0 : i32, i32
  }
  func.func @transform_9(%arg0: i32) -> (i32, i32) {
    %c0_i32 = arith.constant 0 : i32
    %c0_i32_0 = arith.constant 0 : i32
    return %arg0, %c0_i32 : i32, i32
  }
}

</mosaic_0001>

<llo_original>
// kernel: tpu_custom_call.1
$region0: #{tpu_custom_call.1}
  #allocation0 [shape = 'u32[]', space=smem, size = 0x4, offset = 0x4, fixed_abs, tag = 'smem constant byte address 0x4 - core index']
  #allocation1 [shape = 'u32[144,128]{1,0:T(1,128)}', space=vmem, size = 0x12000, scoped, tag = 'internal scratch']
  #allocation2 [shape = 'f32[8,8,32]{2,1,0:T(8,128)}', space=vmem, size = 0x8000, scoped, tag = 'scratch operand']
  #allocation3 [shape = 'f32[8,8,96]{2,1,0:T(8,128)}', space=vmem, size = 0x8000, scoped, tag = 'scratch operand']
  %s0 = inlined_call_operand.hbm [shape: f32[8,8,32], index: 0, kind: input, shape index: {}]
  %s1 = inlined_call_operand.hbm [shape: s32[8,1], index: 1, kind: input, shape index: {}]
  %s2 = inlined_call_operand.hbm [shape: f32[32,96], index: 2, kind: input, shape index: {}]
  %s3 = inlined_call_operand.hbm [shape: f32[16,48], index: 3, kind: input, shape index: {}]
  %s4 = inlined_call_operand.hbm [shape: f32[16,48], index: 4, kind: input, shape index: {}]
  %s5 = inlined_call_operand.hbm [shape: f32[1,96], index: 5, kind: input, shape index: {}]
  %s6 = inlined_call_operand.hbm [shape: f32[1,32], index: 6, kind: input, shape index: {}]
  %s7 = inlined_call_operand.hbm [shape: f32[32,64], index: 7, kind: input, shape index: {}]
  %s8 = inlined_call_operand.hbm [shape: f32[1,64], index: 8, kind: input, shape index: {}]
  %s9 = inlined_call_operand.hbm [shape: f32[8,32], index: 9, kind: output, shape index: {}]
  %s10 = sld [smem:[#allocation0]]
  $region89: #{tpu_custom_call.1} parent=0
    _
  %s12 = ssub.s32 1, %s10
  %s13 = scalar_select 0, %s12, %s10
  $region1: #{tpu_custom_call.1} parent=0
    #allocation4 [shape = 'u8[32768]{0}', space=vmem, size = 0x8000, scoped, tag = 'input window, operand 0, single buffered']
    #allocation5 [shape = 's32[1]{0}', space=sflag, size = 0x4, scoped, tag = 'scoped memory for tpu_custom_call.1']
    #allocation6 [shape = 's32[1]{0}', space=sflag, size = 0x4, scoped, tag = 'scoped memory for tpu_custom_call.1']
    #allocation7 [shape = 'u8[4096]{0}', space=vmem, size = 0x1000, scoped, tag = 'input window, operand 1, single buffered']
    #allocation8 [shape = 's32[1]{0}', space=sflag, size = 0x4, scoped, tag = 'scoped memory for tpu_custom_call.1']
    #allocation9 [shape = 'u8[16384]{0}', space=vmem, size = 0x4000, scoped, tag = 'input window, operand 2, single buffered']
    #allocation10 [shape = 'u8[8192]{0}', space=vmem, size = 0x2000, scoped, tag = 'input window, operand 3, single buffered']
    #allocation11 [shape = 's32[1]{0}', space=sflag, size = 0x4, scoped, tag = 'scoped memory for tpu_custom_call.1']
    #allocation12 [shape = 'u8[8192]{0}', space=vmem, size = 0x2000, scoped, tag = 'input window, operand 4, single buffered']
    #allocation13 [shape = 'u8[512]{0}', space=vmem, size = 0x400, scoped, tag = 'input window, operand 5, single buffered']
    #allocation14 [shape = 's32[1]{0}', space=sflag, size = 0x4, scoped, tag = 'scoped memory for tpu_custom_call.1']
    #allocation15 [shape = 'u8[512]{0}', space=vmem, size = 0x400, scoped, tag = 'input window, operand 6, single buffered']
    #allocation16 [shape = 'u8[16384]{0}', space=vmem, size = 0x4000, scoped, tag = 'input window, operand 7, single buffered']
    #allocation17 [shape = 's32[1]{0}', space=sflag, size = 0x4, scoped, tag = 'scoped memory for tpu_custom_call.1']
    #allocation18 [shape = 'u8[512]{0}', space=vmem, size = 0x400, scoped, tag = 'input window, operand 8, single buffered']
    #allocation19 [shape = 'u8[4096]{0}', space=vmem, size = 0x1000, scoped, tag = 'output window, operand 0, single buffered']
    %14 = vsyncpa [#allocation5], 0
    %15 = vsyncpa [#allocation8], 0
    %16 = vsyncpa [#allocation11], 0
    %17 = vsyncpa [#allocation14], 0
    %18 = vsyncpa [#allocation17], 0
    %19 = vsyncpa [#allocation6], 0
    // Predicated region
    $region2: #{tpu_custom_call.1} parent=1 // pred_check
      _
    $region3: #{tpu_custom_call.1} parent=1 // pred_check_branch
      %21 = sbr.rel (0) target = $region5
    $region4: #{tpu_custom_call.1} parent=1 // pred_region
      %s23 = ssub.s32 1024, 1024
      %24 = vsyncadd [#allocation5], %s23
      %s25 = sshll.u32 [#allocation4], 4
      %s26 = int_to_ptr.vmem [resolvable:$true] %s25
      %31 = dma.hbm_to_vmem [thread:$0]  %s0, 1024, %s26, [#allocation5], 128, 128, 8
    $region5: #{tpu_custom_call.1} parent=1 // pred_fallthru
      _
    // Predicated region
    $region6: #{tpu_custom_call.1} parent=1 // pred_check
      _
    $region7: #{tpu_custom_call.1} parent=1 // pred_check_branch
      %33 = sbr.rel (0) target = $region9
    $region8: #{tpu_custom_call.1} parent=1 // pred_region
      %s35 = ssub.s32 128, 128
      %36 = vsyncadd [#allocation8], %s35
      %s38 = sshll.u32 [#allocation7], 4
      %s39 = int_to_ptr.vmem [resolvable:$true] %s38
      %41 = dma.hbm_to_vmem [thread:$0]  %s1, 128, %s39, [#allocation8]
    $region9: #{tpu_custom_call.1} parent=1 // pred_fallthru
      _
    // Predicated region
    $region10: #{tpu_custom_call.1} parent=1 // pred_check
      _
    $region11: #{tpu_custom_call.1} parent=1 // pred_check_branch
      %43 = sbr.rel (0) target = $region13
    $region12: #{tpu_custom_call.1} parent=1 // pred_region
      %s45 = ssub.s32 512, 512
      %46 = vsyncadd [#allocation8], %s45
      %s47 = sshll.u32 [#allocation9], 4
      %s48 = int_to_ptr.vmem [resolvable:$true] %s47
      %53 = dma.hbm_to_vmem [thread:$0]  %s2, 512, %s48, [#allocation8], 128, 128, 8
    $region13: #{tpu_custom_call.1} parent=1 // pred_fallthru
      _
    // Predicated region
    $region14: #{tpu_custom_call.1} parent=1 // pred_check
      _
    $region15: #{tpu_custom_call.1} parent=1 // pred_check_branch
      %55 = sbr.rel (0) target = $region17
    $region16: #{tpu_custom_call.1} parent=1 // pred_region
      %s57 = ssub.s32 256, 256
      %58 = vsyncadd [#allocation11], %s57
      %s59 = sshll.u32 [#allocation10], 4
      %s60 = int_to_ptr.vmem [resolvable:$true] %s59
      %65 = dma.hbm_to_vmem [thread:$0]  %s3, 256, %s60, [#allocation11], 128, 128, 8
    $region17: #{tpu_custom_call.1} parent=1 // pred_fallthru
      _
    // Predicated region
    $region18: #{tpu_custom_call.1} parent=1 // pred_check
      _
    $region19: #{tpu_custom_call.1} parent=1 // pred_check_branch
      %67 = sbr.rel (0) target = $region21
    $region20: #{tpu_custom_call.1} parent=1 // pred_region
      %s69 = ssub.s32 256, 256
      %70 = vsyncadd [#allocation11], %s69
      %s71 = sshll.u32 [#allocation12], 4
      %s72 = int_to_ptr.vmem [resolvable:$true] %s71
      %77 = dma.hbm_to_vmem [thread:$0]  %s4, 256, %s72, [#allocation11], 128, 128, 8
    $region21: #{tpu_custom_call.1} parent=1 // pred_fallthru
      _
    // Predicated region
    $region22: #{tpu_custom_call.1} parent=1 // pred_check
      _
    $region23: #{tpu_custom_call.1} parent=1 // pred_check_branch
      %79 = sbr.rel (0) target = $region25
    $region24: #{tpu_custom_call.1} parent=1 // pred_region
      %s81 = ssub.s32 16, 16
      %82 = vsyncadd [#allocation14], %s81
      %s84 = sshll.u32 [#allocation13], 4
      %s85 = int_to_ptr.vmem [resolvable:$true] %s84
      %87 = dma.hbm_to_vmem [thread:$0]  %s5, 16, %s85, [#allocation14]
    $region25: #{tpu_custom_call.1} parent=1 // pred_fallthru
      _
    // Predicated region
    $region26: #{tpu_custom_call.1} parent=1 // pred_check
      _
    $region27: #{tpu_custom_call.1} parent=1 // pred_check_branch
      %89 = sbr.rel (0) target = $region29
    $region28: #{tpu_custom_call.1} parent=1 // pred_region
      %s91 = ssub.s32 16, 16
      %92 = vsyncadd [#allocation14], %s91
      %s94 = sshll.u32 [#allocation15], 4
      %s95 = int_to_ptr.vmem [resolvable:$true] %s94
      %97 = dma.hbm_to_vmem [thread:$0]  %s6, 16, %s95, [#allocation14]
    $region29: #{tpu_custom_call.1} parent=1 // pred_fallthru
      _
    // Predicated region
    $region30: #{tpu_custom_call.1} parent=1 // pred_check
      _
    $region31: #{tpu_custom_call.1} parent=1 // pred_check_branch
      %99 = sbr.rel (0) target = $region33
    $region32: #{tpu_custom_call.1} parent=1 // pred_region
      %s101 = ssub.s32 512, 512
      %102 = vsyncadd [#allocation17], %s101
      %s103 = sshll.u32 [#allocation16], 4
      %s104 = int_to_ptr.vmem [resolvable:$true] %s103
      %109 = dma.hbm_to_vmem [thread:$0]  %s7, 512, %s104, [#allocation17], 128, 128, 8
    $region33: #{tpu_custom_call.1} parent=1 // pred_fallthru
      _
    // Predicated region
    $region34: #{tpu_custom_call.1} parent=1 // pred_check
      _
    $region35: #{tpu_custom_call.1} parent=1 // pred_check_branch
      %111 = sbr.rel (0) target = $region37
    $region36: #{tpu_custom_call.1} parent=1 // pred_region
      %s113 = ssub.s32 16, 16
      %114 = vsyncadd [#allocation17], %s113
      %s116 = sshll.u32 [#allocation18], 4
      %s117 = int_to_ptr.vmem [resolvable:$true] %s116
      %119 = dma.hbm_to_vmem [thread:$0]  %s8, 16, %s117, [#allocation17]
    $region37: #{tpu_custom_call.1} parent=1 // pred_fallthru
      _
    // Predicated region
    $region38: #{tpu_custom_call.1} parent=1 // pred_check
      _
    $region39: #{tpu_custom_call.1} parent=1 // pred_check_branch
      %121 = sbr.rel (0) target = $region41
    $region40: #{tpu_custom_call.1} parent=1 // pred_region
      %122 = dma.done [#allocation5], 1024
    $region41: #{tpu_custom_call.1} parent=1 // pred_fallthru
      _
    // Predicated region
    $region42: #{tpu_custom_call.1} parent=1 // pred_check
      _
    $region43: #{tpu_custom_call.1} parent=1 // pred_check_branch
      %124 = sbr.rel (0) target = $region45
    $region44: #{tpu_custom_call.1} parent=1 // pred_region
      %125 = dma.done [#allocation8], 128
    $region45: #{tpu_custom_call.1} parent=1 // pred_fallthru
      _
    // Predicated region
    $region46: #{tpu_custom_call.1} parent=1 // pred_check
      _
    $region47: #{tpu_custom_call.1} parent=1 // pred_check_branch
      %127 = sbr.rel (0) target = $region49
    $region48: #{tpu_custom_call.1} parent=1 // pred_region
      %128 = dma.done [#allocation8], 512
    $region49: #{tpu_custom_call.1} parent=1 // pred_fallthru
      _
    // Predicated region
    $region50: #{tpu_custom_call.1} parent=1 // pred_check
      _
    $region51: #{tpu_custom_call.1} parent=1 // pred_check_branch
      %130 = sbr.rel (0) target = $region53
    $region52: #{tpu_custom_call.1} parent=1 // pred_region
      %131 = dma.done [#allocation11], 256
    $region53: #{tpu_custom_call.1} parent=1 // pred_fallthru
      _
    // Predicated region
    $region54: #{tpu_custom_call.1} parent=1 // pred_check
      _
    $region55: #{tpu_custom_call.1} parent=1 // pred_check_branch
      %133 = sbr.rel (0) target = $region57
    $region56: #{tpu_custom_call.1} parent=1 // pred_region
      %134 = dma.done [#allocation11], 256
    $region57: #{tpu_custom_call.1} parent=1 // pred_fallthru
      _
    // Predicated region
    $region58: #{tpu_custom_call.1} parent=1 // pred_check
      _
    $region59: #{tpu_custom_call.1} parent=1 // pred_check_branch
      %136 = sbr.rel (0) target = $region61
    $region60: #{tpu_custom_call.1} parent=1 // pred_region
      %137 = dma.done [#allocation14], 16
    $region61: #{tpu_custom_call.1} parent=1 // pred_fallthru
      _
    // Predicated region
    $region62: #{tpu_custom_call.1} parent=1 // pred_check
      _
    $region63: #{tpu_custom_call.1} parent=1 // pred_check_branch
      %139 = sbr.rel (0) target = $region65
    $region64: #{tpu_custom_call.1} parent=1 // pred_region
      %140 = dma.done [#allocation14], 16
    $region65: #{tpu_custom_call.1} parent=1 // pred_fallthru
      _
    // Predicated region
    $region66: #{tpu_custom_call.1} parent=1 // pred_check
      _
    $region67: #{tpu_custom_call.1} parent=1 // pred_check_branch
      %142 = sbr.rel (0) target = $region69
    $region68: #{tpu_custom_call.1} parent=1 // pred_region
      %143 = dma.done [#allocation17], 512
    $region69: #{tpu_custom_call.1} parent=1 // pred_fallthru
      _
    // Predicated region
    $region70: #{tpu_custom_call.1} parent=1 // pred_check
      _
    $region71: #{tpu_custom_call.1} parent=1 // pred_check_branch
      %145 = sbr.rel (0) target = $region73
    $region72: #{tpu_custom_call.1} parent=1 // pred_region
      %146 = dma.done [#allocation17], 16
    $region73: #{tpu_custom_call.1} parent=1 // pred_fallthru
      _
    %v147 = vld [vmem:[#allocation4] sm:$0xff]
    %v148 = vld [vmem:[#allocation4 + $0x8] sm:$0xff]
    %v149 = vld [vmem:[#allocation4 + $0x10] sm:$0xff]
    %v150 = vld [vmem:[#allocation4 + $0x18] sm:$0xff]
    %v151 = vld [vmem:[#allocation4 + $0x20] sm:$0xff]
    %v152 = vld [vmem:[#allocation4 + $0x28] sm:$0xff]
    %v153 = vld [vmem:[#allocation4 + $0x30] sm:$0xff]
    %v154 = vld [vmem:[#allocation4 + $0x38] sm:$0xff]
    %v155 = vld [vmem:[#allocation9] sm:$0xff]
    %v156 = vld [vmem:[#allocation9 + $0x8] sm:$0xff]
    %v157 = vld [vmem:[#allocation9 + $0x10] sm:$0xff]
    %v158 = vld [vmem:[#allocation9 + $0x18] sm:$0xff]
    %v159 = vld [vmem:[#allocation13] sm:$0x1]
    %v161 = vlaneseq
    %v162 = vshrl.u32 %v161, 7
    %v163 = vsub.s32 0, %v162
    %v164 = vrot.slane %v159, %v163
    %vm166 = vcmask 261120
    %v168 = vsel %vm166, %v147, 0
    %v171 = vsel %vm166, %v148, 0
    %v174 = vsel %vm166, %v149, 0
    %v177 = vsel %vm166, %v150, 0
    %v180 = vsel %vm166, %v151, 0
    %v183 = vsel %vm166, %v152, 0
    %v186 = vsel %vm166, %v153, 0
    %v189 = vsel %vm166, %v154, 0
    %191 = vmatprep.subr.mxu0 0.0
    %192 = vmatpush1.msra.mxu0 %v155
    %193 = vmatprep.subr.mxu0 0.0
    %194 = vmatpush1.msra.mxu0 %v156
    %195 = vmatprep.subr.mxu0 0.0
    %196 = vmatpush1.msra.mxu0 %v157
    %197 = vmatprep.subr.mxu0 0.0
    %198 = vmatpush1.msra.mxu0 %v158
    %199 = vmatprep.subr.mxu0 0.0
    %200 = vmatpush1.msra.mxu0 0.0
    %201 = vmatprep.subr.mxu0 0.0
    %202 = vmatpush1.msra.mxu0 0.0
    %203 = vmatprep.subr.mxu0 0.0
    %204 = vmatpush1.msra.mxu0 0.0
    %205 = vmatprep.subr.mxu0 0.0
    %206 = vmatpush1.msra.mxu0 0.0
    %207 = vmatprep.subr.mxu0 0.0
    %208 = vmatpush1.msra.mxu0 0.0
    %209 = vmatprep.subr.mxu0 0.0
    %210 = vmatpush1.msra.mxu0 0.0
    %211 = vmatprep.subr.mxu0 0.0
    %212 = vmatpush1.msra.mxu0 0.0
    %213 = vmatprep.subr.mxu0 0.0
    %214 = vmatpush1.msra.mxu0 0.0
    %215 = vmatprep.subr.mxu0 0.0
    %216 = vmatpush1.msra.mxu0 0.0
    %217 = vmatprep.subr.mxu0 0.0
    %218 = vmatpush1.msra.mxu0 0.0
    %219 = vmatprep.subr.mxu0 0.0
    %220 = vmatpush1.msra.mxu0 0.0
    %221 = vmatprep.subr.mxu0 0.0
    %222 = vmatpush1.msra.mxu0 0.0
    %223 = vmatprep.subr.mxu0 0.0
    %224 = vmatpush1.msra.mxu0 0.0
    %225 = vmatprep.subr.mxu0 0.0
    %226 = vmatpush1.msra.mxu0 0.0
    %227 = vmatprep.subr.mxu0 0.0
    %228 = vmatpush1.msra.mxu0 0.0
    %229 = vmatprep.subr.mxu0 0.0
    %230 = vmatpush1.msra.mxu0 0.0
    %231 = vmatprep.subr.mxu0 0.0
    %232 = vmatpush1.msra.mxu0 0.0
    %233 = vmatprep.subr.mxu0 0.0
    %234 = vmatpush1.msra.mxu0 0.0
    %235 = vmatprep.subr.mxu0 0.0
    %236 = vmatpush1.msra.mxu0 0.0
    %237 = vmatprep.subr.mxu0 0.0
    %238 = vmatpush1.msra.mxu0 0.0
    %239 = vmatprep.subr.mxu0 0.0
    %240 = vmatpush1.msra.mxu0 0.0
    %241 = vmatprep.subr.mxu0 0.0
    %242 = vmatpush1.msra.mxu0 0.0
    %243 = vmatprep.subr.mxu0 0.0
    %244 = vmatpush1.msra.mxu0 0.0
    %245 = vmatprep.subr.mxu0 0.0
    %246 = vmatpush1.msra.mxu0 0.0
    %247 = vmatprep.subr.mxu0 0.0
    %248 = vmatpush1.msra.mxu0 0.0
    %249 = vmatprep.subr.mxu0 0.0
    %250 = vmatpush1.msra.mxu0 0.0
    %251 = vmatprep.subr.mxu0 0.0
    %252 = vmatpush1.msra.mxu0 0.0
    %253 = vmatprep.subr.mxu0 0.0
    %254 = vmatpush1.msra.mxu0 0.0
    %255 = vmatprep.mubr.f32.mxu0 0.0
    %256 = vmatmul.mubr.f32.gmra.mrb[0].mxu0 %v168
    %v257 = vpop.f32.mrb[0].mxu0
    %v258 = vadd.f32 %v164, %v257
    %v259 = vpop.f32.mrb[0].mxu0
    %260 = vmatprep.mubr.f32.mxu0 0.0
    %261 = vmatmul.mubr.f32.gmra.mrb[0].mxu0 %v171
    %v262 = vpop.f32.mrb[0].mxu0
    %v263 = vadd.f32 %v164, %v262
    %v264 = vpop.f32.mrb[0].mxu0
    %265 = vmatprep.mubr.f32.mxu0 0.0
    %266 = vmatmul.mubr.f32.gmra.mrb[0].mxu0 %v174
    %v267 = vpop.f32.mrb[0].mxu0
    %v268 = vadd.f32 %v164, %v267
    %v269 = vpop.f32.mrb[0].mxu0
    %270 = vmatprep.mubr.f32.mxu0 0.0
    %271 = vmatmul.mubr.f32.gmra.mrb[0].mxu0 %v177
    %v272 = vpop.f32.mrb[0].mxu0
    %v273 = vadd.f32 %v164, %v272
    %v274 = vpop.f32.mrb[0].mxu0
    %275 = vmatprep.mubr.f32.mxu0 0.0
    %276 = vmatmul.mubr.f32.gmra.mrb[0].mxu0 %v180
    %v277 = vpop.f32.mrb[0].mxu0
    %v278 = vadd.f32 %v164, %v277
    %v279 = vpop.f32.mrb[0].mxu0
    %280 = vmatprep.mubr.f32.mxu0 0.0
    %281 = vmatmul.mubr.f32.gmra.mrb[0].mxu0 %v183
    %v282 = vpop.f32.mrb[0].mxu0
    %v283 = vadd.f32 %v164, %v282
    %v284 = vpop.f32.mrb[0].mxu0
    %285 = vmatprep.mubr.f32.mxu0 0.0
    %286 = vmatmul.mubr.f32.gmra.mrb[0].mxu0 %v186
    %v287 = vpop.f32.mrb[0].mxu0
    %v288 = vadd.f32 %v164, %v287
    %v289 = vpop.f32.mrb[0].mxu0
    %290 = vmatprep.mubr.f32.mxu0 0.0
    %291 = vmatmul.mubr.f32.gmra.mrb[0].mxu0 %v189
    %v292 = vpop.f32.mrb[0].mxu0
    %v293 = vadd.f32 %v164, %v292
    %v294 = vpop.f32.mrb[0].mxu0
    %295 = vdwg.mxu0
    %vm296 = vcmask 785408
    %297 = vst.msk [vmem:[#allocation3] sm:$0xff] %vm296, %v258
    %298 = vst.msk [vmem:[#allocation3 + $0x8] sm:$0xff] %vm296, %v263
    %299 = vst.msk [vmem:[#allocation3 + $0x10] sm:$0xff] %vm296, %v268
    %300 = vst.msk [vmem:[#allocation3 + $0x18] sm:$0xff] %vm296, %v273
    %301 = vst.msk [vmem:[#allocation3 + $0x20] sm:$0xff] %vm296, %v278
    %302 = vst.msk [vmem:[#allocation3 + $0x28] sm:$0xff] %vm296, %v283
    %303 = vst.msk [vmem:[#allocation3 + $0x30] sm:$0xff] %vm296, %v288
    %304 = vst.msk [vmem:[#allocation3 + $0x38] sm:$0xff] %vm296, %v293
    %v305 = vld [vmem:[#allocation7] sm:$0xff]
    %v306 = vld [vmem:[#allocation10] sm:$0xff]
    %v307 = vld [vmem:[#allocation10 + $0x8] sm:$0xff]
    %v308 = vld [vmem:[#allocation12] sm:$0xff]
    %v309 = vld [vmem:[#allocation12 + $0x8] sm:$0xff]
    %v310 = vld [vmem:[#allocation15] sm:$0x1]
    %v312 = vlaneseq
    %v313 = vshrl.u32 %v312, 7
    %v314 = vsub.s32 0, %v313
    %v315 = vrot.slane %v310, %v314
    loop: start=0, step=1, limit=8
    $region74: #{tpu_custom_call.1} parent=1 // loop_pre_header
      _
    $region75: #{tpu_custom_call.1} parent=1 // loop_header
      %s317 = sphi 0, %s321
      %p318 = scmp.ge.s32.totalorder %s317, 8
      %v322 = vphi 0.0, %v575
      %v323 = vphi 0.0, %v576
    $region76: #{tpu_custom_call.1} parent=1 // loop_header_branch
      %320 = sbr.rel (%p318) target = $region80
    $region77: #{tpu_custom_call.1} parent=1 // loop_body
      %s324 = ssub.s32 7, %s317
      %s325 = smul.u32 %s317, 8
      %s326 = scalar_lea.vmem [#allocation3], %s325
      %v327 = vld [vmem:[%s326] sm:$0xff]
      %s328 = smul.u32 %s324, 8
      %s329 = scalar_lea.vmem [#allocation3], %s328
      %v330 = vld [vmem:[%s329] sm:$0xff]
      %332 = vrot.lane.b32.xlu0 %v322, 112
      %v333 = vpop.permute.xlu0 %332
      %vm334 = vcmask 130048
      %v335 = vsel %vm334, %v333, 0
      %337 = vmatprep.subr.mxu0 0.0
      %338 = vmatpush1.msra.mxu0 %v306
      %339 = vmatprep.subr.mxu0 0.0
      %340 = vmatpush1.msra.mxu0 %v307
      %341 = vmatprep.subr.mxu0 0.0
      %342 = vmatpush1.msra.mxu0 0.0
      %343 = vmatprep.subr.mxu0 0.0
      %344 = vmatpush1.msra.mxu0 0.0
      %345 = vmatprep.subr.mxu0 0.0
      %346 = vmatpush1.msra.mxu0 0.0
      %347 = vmatprep.subr.mxu0 0.0
      %348 = vmatpush1.msra.mxu0 0.0
      %349 = vmatprep.subr.mxu0 0.0
      %350 = vmatpush1.msra.mxu0 0.0
      %351 = vmatprep.subr.mxu0 0.0
      %352 = vmatpush1.msra.mxu0 0.0
      %353 = vmatprep.subr.mxu0 0.0
      %354 = vmatpush1.msra.mxu0 0.0
      %355 = vmatprep.subr.mxu0 0.0
      %356 = vmatpush1.msra.mxu0 0.0
      %357 = vmatprep.subr.mxu0 0.0
      %358 = vmatpush1.msra.mxu0 0.0
      %359 = vmatprep.subr.mxu0 0.0
      %360 = vmatpush1.msra.mxu0 0.0
      %361 = vmatprep.subr.mxu0 0.0
      %362 = vmatpush1.msra.mxu0 0.0
      %363 = vmatprep.subr.mxu0 0.0
      %364 = vmatpush1.msra.mxu0 0.0
      %365 = vmatprep.subr.mxu0 0.0
      %366 = vmatpush1.msra.mxu0 0.0
      %367 = vmatprep.subr.mxu0 0.0
      %368 = vmatpush1.msra.mxu0 0.0
      %369 = vmatprep.subr.mxu0 0.0
      %370 = vmatpush1.msra.mxu0 0.0
      %371 = vmatprep.subr.mxu0 0.0
      %372 = vmatpush1.msra.mxu0 0.0
      %373 = vmatprep.subr.mxu0 0.0
      %374 = vmatpush1.msra.mxu0 0.0
      %375 = vmatprep.subr.mxu0 0.0
      %376 = vmatpush1.msra.mxu0 0.0
      %377 = vmatprep.subr.mxu0 0.0
      %378 = vmatpush1.msra.mxu0 0.0
      %379 = vmatprep.subr.mxu0 0.0
      %380 = vmatpush1.msra.mxu0 0.0
      %381 = vmatprep.subr.mxu0 0.0
      %382 = vmatpush1.msra.mxu0 0.0
      %383 = vmatprep.subr.mxu0 0.0
      %384 = vmatpush1.msra.mxu0 0.0
      %385 = vmatprep.subr.mxu0 0.0
      %386 = vmatpush1.msra.mxu0 0.0
      %387 = vmatprep.subr.mxu0 0.0
      %388 = vmatpush1.msra.mxu0 0.0
      %389 = vmatprep.subr.mxu0 0.0
      %390 = vmatpush1.msra.mxu0 0.0
      %391 = vmatprep.subr.mxu0 0.0
      %392 = vmatpush1.msra.mxu0 0.0
      %393 = vmatprep.subr.mxu0 0.0
      %394 = vmatpush1.msra.mxu0 0.0
      %395 = vmatprep.subr.mxu0 0.0
      %396 = vmatpush1.msra.mxu0 0.0
      %397 = vmatprep.subr.mxu0 0.0
      %398 = vmatpush1.msra.mxu0 0.0
      %399 = vmatprep.subr.mxu0 0.0
      %400 = vmatpush1.msra.mxu0 0.0
      %401 = vmatprep.mubr.f32.mxu0 0.0
      %402 = vmatmul.mubr.f32.gmra.mrb[0].mxu0 %v335
      %v403 = vpop.f32.mrb[0].mxu0
      %v404 = vadd.f32 0.0, %v403
      %v405 = vpop.f32.mrb[0].mxu0
      %406 = vdwg.mxu0
      %408 = vrot.lane.b32.xlu0 %v323, 64
      %v409 = vpop.permute.xlu0 %408
      %v410 = vsel %vm334, %v409, 0
      %412 = vmatprep.subr.mxu0 0.0
      %413 = vmatpush1.msra.mxu0 %v308
      %414 = vmatprep.subr.mxu0 0.0
      %415 = vmatpush1.msra.mxu0 %v309
      %416 = vmatprep.subr.mxu0 0.0
      %417 = vmatpush1.msra.mxu0 0.0
      %418 = vmatprep.subr.mxu0 0.0
      %419 = vmatpush1.msra.mxu0 0.0
      %420 = vmatprep.subr.mxu0 0.0
      %421 = vmatpush1.msra.mxu0 0.0
      %422 = vmatprep.subr.mxu0 0.0
      %423 = vmatpush1.msra.mxu0 0.0
      %424 = vmatprep.subr.mxu0 0.0
      %425 = vmatpush1.msra.mxu0 0.0
      %426 = vmatprep.subr.mxu0 0.0
      %427 = vmatpush1.msra.mxu0 0.0
      %428 = vmatprep.subr.mxu0 0.0
      %429 = vmatpush1.msra.mxu0 0.0
      %430 = vmatprep.subr.mxu0 0.0
      %431 = vmatpush1.msra.mxu0 0.0
      %432 = vmatprep.subr.mxu0 0.0
      %433 = vmatpush1.msra.mxu0 0.0
      %434 = vmatprep.subr.mxu0 0.0
      %435 = vmatpush1.msra.mxu0 0.0
      %436 = vmatprep.subr.mxu0 0.0
      %437 = vmatpush1.msra.mxu0 0.0
      %438 = vmatprep.subr.mxu0 0.0
      %439 = vmatpush1.msra.mxu0 0.0
      %440 = vmatprep.subr.mxu0 0.0
      %441 = vmatpush1.msra.mxu0 0.0
      %442 = vmatprep.subr.mxu0 0.0
      %443 = vmatpush1.msra.mxu0 0.0
      %444 = vmatprep.subr.mxu0 0.0
      %445 = vmatpush1.msra.mxu0 0.0
      %446 = vmatprep.subr.mxu0 0.0
      %447 = vmatpush1.msra.mxu0 0.0
      %448 = vmatprep.subr.mxu0 0.0
      %449 = vmatpush1.msra.mxu0 0.0
      %450 = vmatprep.subr.mxu0 0.0
      %451 = vmatpush1.msra.mxu0 0.0
      %452 = vmatprep.subr.mxu0 0.0
      %453 = vmatpush1.msra.mxu0 0.0
      %454 = vmatprep.subr.mxu0 0.0
      %455 = vmatpush1.msra.mxu0 0.0
      %456 = vmatprep.subr.mxu0 0.0
      %457 = vmatpush1.msra.mxu0 0.0
      %458 = vmatprep.subr.mxu0 0.0
      %459 = vmatpush1.msra.mxu0 0.0
      %460 = vmatprep.subr.mxu0 0.0
      %461 = vmatpush1.msra.mxu0 0.0
      %462 = vmatprep.subr.mxu0 0.0
      %463 = vmatpush1.msra.mxu0 0.0
      %464 = vmatprep.subr.mxu0 0.0
      %465 = vmatpush1.msra.mxu0 0.0
      %466 = vmatprep.subr.mxu0 0.0
      %467 = vmatpush1.msra.mxu0 0.0
      %468 = vmatprep.subr.mxu0 0.0
      %469 = vmatpush1.msra.mxu0 0.0
      %470 = vmatprep.subr.mxu0 0.0
      %471 = vmatpush1.msra.mxu0 0.0
      %472 = vmatprep.subr.mxu0 0.0
      %473 = vmatpush1.msra.mxu0 0.0
      %474 = vmatprep.subr.mxu0 0.0
      %475 = vmatpush1.msra.mxu0 0.0
      %476 = vmatprep.mubr.f32.mxu0 0.0
      %477 = vmatmul.mubr.f32.gmra.mrb[0].mxu0 %v410
      %v478 = vpop.f32.mrb[0].mxu0
      %v479 = vadd.f32 0.0, %v478
      %v480 = vpop.f32.mrb[0].mxu0
      %481 = vdwg.mxu0
      %v482 = vadd.f32 %v327, %v404
      %v483 = vxor.u32 %v482, 2147483648
      %v484 = vmul.f32 %v483, 1.442695
      %v485 = vpow.pop %v484
      %v486 = vadd.f32 %v485, 1.0
      %v487 = vrcp.pop %v486
      %v488 = vmul.f32 1.0, %v487
      %489 = vrot.lane.b32.xlu0 %v315, 32
      %v490 = vpop.permute.xlu0 %489
      %v492 = vadd.f32 %v404, %v490
      %494 = vrot.lane.b32.xlu0 %v492, 96
      %v495 = vpop.permute.xlu0 %494
      %v497 = vmul.f32 %v488, %v495
      %499 = vrot.lane.b32.xlu0 %v497, 32
      %v500 = vpop.permute.xlu0 %499
      %v502 = vadd.f32 %v327, %v500
      %v503 = vtanh.pop %v502
      %v504 = vsub.f32 1.0, %v488
      %506 = vrot.lane.b32.xlu0 %v503, 112
      %v507 = vpop.permute.xlu0 %506
      %v509 = vmul.f32 %v504, %v507
      %v510 = vmul.f32 %v488, %v322
      %v511 = vadd.f32 %v509, %v510
      %513 = vrot.lane.b32.xlu0 %v479, 48
      %v514 = vpop.permute.xlu0 %513
      %v516 = vadd.f32 %v330, %v514
      %v517 = vxor.u32 %v516, 2147483648
      %v518 = vmul.f32 %v517, 1.442695
      %v519 = vpow.pop %v518
      %v520 = vadd.f32 %v519, 1.0
      %v521 = vrcp.pop %v520
      %v522 = vmul.f32 1.0, %v521
      %523 = vrot.lane.b32.xlu0 %v315, 16
      %v524 = vpop.permute.xlu0 %523
      %v526 = vadd.f32 %v479, %v524
      %528 = vrot.lane.b32.xlu0 %v526, 16
      %v529 = vpop.permute.xlu0 %528
      %v531 = vmul.f32 %v522, %v529
      %533 = vrot.lane.b32.xlu0 %v531, 32
      %v534 = vpop.permute.xlu0 %533
      %v536 = vadd.f32 %v330, %v534
      %v537 = vtanh.pop %v536
      %v538 = vsub.f32 1.0, %v522
      %540 = vrot.lane.b32.xlu0 %v537, 112
      %v541 = vpop.permute.xlu0 %540
      %v543 = vmul.f32 %v538, %v541
      %v544 = vmul.f32 %v522, %v323
      %v545 = vadd.f32 %v543, %v544
      %v546 = vstv %s317
      %vm547 = vcmp.gt.s32.totalorder %v305, %v546
      %v548 = vstv %s324
      %vm549 = vcmp.gt.s32.totalorder %v305, %v548
      %v550 = vsel %vm547, 1, 0
      %551 = vset.pattern.permute.xlu0 0
      %552 = vperm.xlu0 %551, %v550
      %v553 = vpop.permute.xlu0 %552
      %vm554 = vcmp.eq.s32.totalorder %v553, 1
      %v555 = vsel %vm554, %v511, 0.0
      %557 = vrot.lane.b32.xlu0 %v555, 112
      %v558 = vpop.permute.xlu0 %557
      %s560 = scalar_lea.vmem [#allocation2], %s325
      %561 = vst.msk [vmem:[%s560] sm:$0xff] %vm334, %v558
      %v562 = vsel %vm549, 1, 0
      %563 = vset.pattern.permute.xlu0 0
      %564 = vperm.xlu0 %563, %v562
      %v565 = vpop.permute.xlu0 %564
      %vm566 = vcmp.eq.s32.totalorder %v565, 1
      %v567 = vsel %vm566, %v545, 0.0
      %569 = vrot.lane.b32.xlu0 %v567, 80
      %v570 = vpop.permute.xlu0 %569
      %s572 = scalar_lea.vmem [#allocation2], %s328
      %vm573 = vcmask 261248
      %574 = vst.msk [vmem:[%s572] sm:$0xff] %vm573, %v570
      %v575 = vsel %vm554, %v511, %v322
      %v576 = vsel %vm566, %v545, %v323
    $region78: #{tpu_custom_call.1} parent=1 // loop_footer
      %s321 = sadd.s32 1, %s317
    $region79: #{tpu_custom_call.1} parent=1 // loop_footer_branch
      %316 = sbr.rel target = $region75
    $region80: #{tpu_custom_call.1} parent=1 // loop_exit
      _
    %v577 = vld [vmem:[#allocation2] sm:$0xff]
    %v578 = vld [vmem:[#allocation2 + $0x8] sm:$0xff]
    %v579 = vld [vmem:[#allocation2 + $0x10] sm:$0xff]
    %v580 = vld [vmem:[#allocation2 + $0x18] sm:$0xff]
    %v581 = vld [vmem:[#allocation2 + $0x20] sm:$0xff]
    %v582 = vld [vmem:[#allocation2 + $0x28] sm:$0xff]
    %v583 = vld [vmem:[#allocation2 + $0x30] sm:$0xff]
    %v584 = vld [vmem:[#allocation2 + $0x38] sm:$0xff]
    %v585 = vcombine.low %v577, %v579
    %v586 = vcombine.high %v577, %v579
    %v588 = vunpack.c.l.s4 1983009808
    %v589 = vunpack.c.0.s8 %v588
    %v590 = vlaneseq
    %v591 = vshrl.u32 %v590, 7
    %v592 = vsub.s32 %v589, %v591
    %v593 = vrot.slane %v585, %v592
    %v595 = vunpack.c.l.s4 1983009808
    %v596 = vunpack.c.0.s8 %v595
    %v597 = vlaneseq
    %v598 = vshrl.u32 %v597, 7
    %v599 = vsub.s32 %v596, %v598
    %v600 = vrot.slane %v586, %v599
    %v601 = vcombine.low %v578, %v580
    %v602 = vcombine.high %v578, %v580
    %v604 = vunpack.c.l.s4 1983009808
    %v605 = vunpack.c.0.s8 %v604
    %v606 = vlaneseq
    %v607 = vshrl.u32 %v606, 7
    %v608 = vsub.s32 %v605, %v607
    %v609 = vrot.slane %v601, %v608
    %v611 = vunpack.c.l.s4 1983009808
    %v612 = vunpack.c.0.s8 %v611
    %v613 = vlaneseq
    %v614 = vshrl.u32 %v613, 7
    %v615 = vsub.s32 %v612, %v614
    %v616 = vrot.slane %v602, %v615
    %v617 = vcombine.low %v581, %v583
    %v618 = vcombine.high %v581, %v583
    %v620 = vunpack.c.l.s4 1983009808
    %v621 = vunpack.c.0.s8 %v620
    %v622 = vlaneseq
    %v623 = vshrl.u32 %v622, 7
    %v624 = vsub.s32 %v621, %v623
    %v625 = vrot.slane %v617, %v624
    %v627 = vunpack.c.l.s4 1983009808
    %v628 = vunpack.c.0.s8 %v627
    %v629 = vlaneseq
    %v630 = vshrl.u32 %v629, 7
    %v631 = vsub.s32 %v628, %v630
    %v632 = vrot.slane %v618, %v631
    %v633 = vcombine.low %v582, %v584
    %v634 = vcombine.high %v582, %v584
    %v636 = vunpack.c.l.s4 1983009808
    %v637 = vunpack.c.0.s8 %v636
    %v638 = vlaneseq
    %v639 = vshrl.u32 %v638, 7
    %v640 = vsub.s32 %v637, %v639
    %v641 = vrot.slane %v633, %v640
    %v643 = vunpack.c.l.s4 1983009808
    %v644 = vunpack.c.0.s8 %v643
    %v645 = vlaneseq
    %v646 = vshrl.u32 %v645, 7
    %v647 = vsub.s32 %v644, %v646
    %v648 = vrot.slane %v634, %v647
    %v649 = vcombine.low %v593, %v609
    %v650 = vcombine.high %v593, %v609
    %v652 = vunpack.c.l.s4 1934713408
    %v653 = vunpack.c.0.s8 %v652
    %v654 = vlaneseq
    %v655 = vshrl.u32 %v654, 7
    %v656 = vsub.s32 %v653, %v655
    %v657 = vrot.slane %v649, %v656
    %v659 = vunpack.c.l.s4 1934713408
    %v660 = vunpack.c.0.s8 %v659
    %v661 = vlaneseq
    %v662 = vshrl.u32 %v661, 7
    %v663 = vsub.s32 %v660, %v662
    %v664 = vrot.slane %v650, %v663
    %v665 = vcombine.low %v600, %v616
    %v666 = vcombine.high %v600, %v616
    %v668 = vunpack.c.l.s4 1934713408
    %v669 = vunpack.c.0.s8 %v668
    %v670 = vlaneseq
    %v671 = vshrl.u32 %v670, 7
    %v672 = vsub.s32 %v669, %v671
    %v673 = vrot.slane %v665, %v672
    %v675 = vunpack.c.l.s4 1934713408
    %v676 = vunpack.c.0.s8 %v675
    %v677 = vlaneseq
    %v678 = vshrl.u32 %v677, 7
    %v679 = vsub.s32 %v676, %v678
    %v680 = vrot.slane %v666, %v679
    %v681 = vcombine.low %v625, %v641
    %v682 = vcombine.high %v625, %v641
    %v684 = vunpack.c.l.s4 1934713408
    %v685 = vunpack.c.0.s8 %v684
    %v686 = vlaneseq
    %v687 = vshrl.u32 %v686, 7
    %v688 = vsub.s32 %v685, %v687
    %v689 = vrot.slane %v681, %v688
    %v691 = vunpack.c.l.s4 1934713408
    %v692 = vunpack.c.0.s8 %v691
    %v693 = vlaneseq
    %v694 = vshrl.u32 %v693, 7
    %v695 = vsub.s32 %v692, %v694
    %v696 = vrot.slane %v682, %v695
    %v697 = vcombine.low %v632, %v648
    %v698 = vcombine.high %v632, %v648
    %v700 = vunpack.c.l.s4 1934713408
    %v701 = vunpack.c.0.s8 %v700
    %v702 = vlaneseq
    %v703 = vshrl.u32 %v702, 7
    %v704 = vsub.s32 %v701, %v703
    %v705 = vrot.slane %v697, %v704
    %v707 = vunpack.c.l.s4 1934713408
    %v708 = vunpack.c.0.s8 %v707
    %v709 = vlaneseq
    %v710 = vshrl.u32 %v709, 7
    %v711 = vsub.s32 %v708, %v710
    %v712 = vrot.slane %v698, %v711
    %v713 = vcombine.low %v657, %v689
    %v714 = vcombine.high %v657, %v689
    %v715 = vcombine.low %v664, %v696
    %v716 = vcombine.high %v664, %v696
    %v717 = vcombine.low %v673, %v705
    %v718 = vcombine.high %v673, %v705
    %v719 = vcombine.low %v680, %v712
    %v720 = vcombine.high %v680, %v712
    %v721 = vld [vmem:[#allocation16] sm:$0xff]
    %v722 = vld [vmem:[#allocation16 + $0x8] sm:$0xff]
    %v723 = vld [vmem:[#allocation16 + $0x10] sm:$0xff]
    %v724 = vld [vmem:[#allocation16 + $0x18] sm:$0xff]
    %v725 = vld [vmem:[#allocation18] sm:$0x1]
    %v727 = vlaneseq
    %v728 = vshrl.u32 %v727, 7
    %v729 = vsub.s32 0, %v728
    %v730 = vrot.slane %v725, %v729
    %v733 = vsel %vm166, %v713, 0
    %v736 = vsel %vm166, %v714, 0
    %v739 = vsel %vm166, %v715, 0
    %v742 = vsel %vm166, %v716, 0
    %v745 = vsel %vm166, %v717, 0
    %v748 = vsel %vm166, %v718, 0
    %v751 = vsel %vm166, %v719, 0
    %v754 = vsel %vm166, %v720, 0
    %756 = vmatprep.subr.mxu0 0.0
    %757 = vmatpush1.msra.mxu0 %v721
    %758 = vmatprep.subr.mxu0 0.0
    %759 = vmatpush1.msra.mxu0 %v722
    %760 = vmatprep.subr.mxu0 0.0
    %761 = vmatpush1.msra.mxu0 %v723
    %762 = vmatprep.subr.mxu0 0.0
    %763 = vmatpush1.msra.mxu0 %v724
    %764 = vmatprep.subr.mxu0 0.0
    %765 = vmatpush1.msra.mxu0 0.0
    %766 = vmatprep.subr.mxu0 0.0
    %767 = vmatpush1.msra.mxu0 0.0
    %768 = vmatprep.subr.mxu0 0.0
    %769 = vmatpush1.msra.mxu0 0.0
    %770 = vmatprep.subr.mxu0 0.0
    %771 = vmatpush1.msra.mxu0 0.0
    %772 = vmatprep.subr.mxu0 0.0
    %773 = vmatpush1.msra.mxu0 0.0
    %774 = vmatprep.subr.mxu0 0.0
    %775 = vmatpush1.msra.mxu0 0.0
    %776 = vmatprep.subr.mxu0 0.0
    %777 = vmatpush1.msra.mxu0 0.0
    %778 = vmatprep.subr.mxu0 0.0
    %779 = vmatpush1.msra.mxu0 0.0
    %780 = vmatprep.subr.mxu0 0.0
    %781 = vmatpush1.msra.mxu0 0.0
    %782 = vmatprep.subr.mxu0 0.0
    %783 = vmatpush1.msra.mxu0 0.0
    %784 = vmatprep.subr.mxu0 0.0
    %785 = vmatpush1.msra.mxu0 0.0
    %786 = vmatprep.subr.mxu0 0.0
    %787 = vmatpush1.msra.mxu0 0.0
    %788 = vmatprep.subr.mxu0 0.0
    %789 = vmatpush1.msra.mxu0 0.0
    %790 = vmatprep.subr.mxu0 0.0
    %791 = vmatpush1.msra.mxu0 0.0
    %792 = vmatprep.subr.mxu0 0.0
    %793 = vmatpush1.msra.mxu0 0.0
    %794 = vmatprep.subr.mxu0 0.0
    %795 = vmatpush1.msra.mxu0 0.0
    %796 = vmatprep.subr.mxu0 0.0
    %797 = vmatpush1.msra.mxu0 0.0
    %798 = vmatprep.subr.mxu0 0.0
    %799 = vmatpush1.msra.mxu0 0.0
    %800 = vmatprep.subr.mxu0 0.0
    %801 = vmatpush1.msra.mxu0 0.0
    %802 = vmatprep.subr.mxu0 0.0
    %803 = vmatpush1.msra.mxu0 0.0
    %804 = vmatprep.subr.mxu0 0.0
    %805 = vmatpush1.msra.mxu0 0.0
    %806 = vmatprep.subr.mxu0 0.0
    %807 = vmatpush1.msra.mxu0 0.0
    %808 = vmatprep.subr.mxu0 0.0
    %809 = vmatpush1.msra.mxu0 0.0
    %810 = vmatprep.subr.mxu0 0.0
    %811 = vmatpush1.msra.mxu0 0.0
    %812 = vmatprep.subr.mxu0 0.0
    %813 = vmatpush1.msra.mxu0 0.0
    %814 = vmatprep.subr.mxu0 0.0
    %815 = vmatpush1.msra.mxu0 0.0
    %816 = vmatprep.subr.mxu0 0.0
    %817 = vmatpush1.msra.mxu0 0.0
    %818 = vmatprep.subr.mxu0 0.0
    %819 = vmatpush1.msra.mxu0 0.0
    %820 = vmatprep.mubr.f32.mxu0 0.0
    %821 = vmatmul.mubr.f32.gmra.mrb[0].mxu0 %v733
    %v822 = vpop.f32.mrb[0].mxu0
    %v823 = vadd.f32 %v730, %v822
    %v824 = vpop.f32.mrb[0].mxu0
    %825 = vmatprep.mubr.f32.mxu0 0.0
    %826 = vmatmul.mubr.f32.gmra.mrb[0].mxu0 %v736
    %v827 = vpop.f32.mrb[0].mxu0
    %v828 = vadd.f32 %v730, %v827
    %v829 = vpop.f32.mrb[0].mxu0
    %830 = vmatprep.mubr.f32.mxu0 0.0
    %831 = vmatmul.mubr.f32.gmra.mrb[0].mxu0 %v739
    %v832 = vpop.f32.mrb[0].mxu0
    %v833 = vadd.f32 %v730, %v832
    %v834 = vpop.f32.mrb[0].mxu0
    %835 = vmatprep.mubr.f32.mxu0 0.0
    %836 = vmatmul.mubr.f32.gmra.mrb[0].mxu0 %v742
    %v837 = vpop.f32.mrb[0].mxu0
    %v838 = vadd.f32 %v730, %v837
    %v839 = vpop.f32.mrb[0].mxu0
    %840 = vmatprep.mubr.f32.mxu0 0.0
    %841 = vmatmul.mubr.f32.gmra.mrb[0].mxu0 %v745
    %v842 = vpop.f32.mrb[0].mxu0
    %v843 = vadd.f32 %v730, %v842
    %v844 = vpop.f32.mrb[0].mxu0
    %845 = vmatprep.mubr.f32.mxu0 0.0
    %846 = vmatmul.mubr.f32.gmra.mrb[0].mxu0 %v748
    %v847 = vpop.f32.mrb[0].mxu0
    %v848 = vadd.f32 %v730, %v847
    %v849 = vpop.f32.mrb[0].mxu0
    %850 = vmatprep.mubr.f32.mxu0 0.0
    %851 = vmatmul.mubr.f32.gmra.mrb[0].mxu0 %v751
    %v852 = vpop.f32.mrb[0].mxu0
    %v853 = vadd.f32 %v730, %v852
    %v854 = vpop.f32.mrb[0].mxu0
    %855 = vmatprep.mubr.f32.mxu0 0.0
    %856 = vmatmul.mubr.f32.gmra.mrb[0].mxu0 %v754
    %v857 = vpop.f32.mrb[0].mxu0
    %v858 = vadd.f32 %v730, %v857
    %v859 = vpop.f32.mrb[0].mxu0
    %860 = vdwg.mxu0
    %v861 = vtanh.pop %v823
    %v862 = vtanh.pop %v828
    %v863 = vtanh.pop %v833
    %v864 = vtanh.pop %v838
    %v865 = vtanh.pop %v843
    %v866 = vtanh.pop %v848
    %v867 = vtanh.pop %v853
    %v868 = vtanh.pop %v858
    %870 = vrot.lane.b32.xlu0 %v861, 96
    %v871 = vpop.permute.xlu0 %870
    %v872 = vsel %vm166, %v861, 0
    %v874 = vsel %vm166, %v871, 0
    %876 = vmatprep.subr.mxu0 0.0
    %877 = vmatpush1.xpose.msra.mxu0 %v874
    %878 = vmatprep.subr.mxu0 0.0
    %879 = vmatpush1.xpose.msra.mxu0 0.0
    %880 = vmatprep.subr.mxu0 0.0
    %881 = vmatpush1.xpose.msra.mxu0 0.0
    %882 = vmatprep.subr.mxu0 0.0
    %883 = vmatpush1.xpose.msra.mxu0 0.0
    %884 = vmatprep.subr.mxu0 0.0
    %885 = vmatpush1.xpose.msra.mxu0 0.0
    %886 = vmatprep.subr.mxu0 0.0
    %887 = vmatpush1.xpose.msra.mxu0 0.0
    %888 = vmatprep.subr.mxu0 0.0
    %889 = vmatpush1.xpose.msra.mxu0 0.0
    %890 = vmatprep.subr.mxu0 0.0
    %891 = vmatpush1.xpose.msra.mxu0 0.0
    %892 = vmatprep.subr.mxu0 0.0
    %893 = vmatpush1.xpose.msra.mxu0 0.0
    %894 = vmatprep.subr.mxu0 0.0
    %895 = vmatpush1.xpose.msra.mxu0 0.0
    %896 = vmatprep.subr.mxu0 0.0
    %897 = vmatpush1.xpose.msra.mxu0 0.0
    %898 = vmatprep.subr.mxu0 0.0
    %899 = vmatpush1.xpose.msra.mxu0 0.0
    %900 = vmatprep.subr.mxu0 0.0
    %901 = vmatpush1.xpose.msra.mxu0 0.0
    %902 = vmatprep.subr.mxu0 0.0
    %903 = vmatpush1.xpose.msra.mxu0 0.0
    %904 = vmatprep.subr.mxu0 0.0
    %905 = vmatpush1.xpose.msra.mxu0 0.0
    %906 = vmatprep.subr.mxu0 0.0
    %907 = vmatpush1.xpose.msra.mxu0 0.0
    %908 = vmatprep.subr.mxu0 0.0
    %909 = vmatpush1.xpose.msra.mxu0 0.0
    %910 = vmatprep.subr.mxu0 0.0
    %911 = vmatpush1.xpose.msra.mxu0 0.0
    %912 = vmatprep.subr.mxu0 0.0
    %913 = vmatpush1.xpose.msra.mxu0 0.0
    %914 = vmatprep.subr.mxu0 0.0
    %915 = vmatpush1.xpose.msra.mxu0 0.0
    %916 = vmatprep.subr.mxu0 0.0
    %917 = vmatpush1.xpose.msra.mxu0 0.0
    %918 = vmatprep.subr.mxu0 0.0
    %919 = vmatpush1.xpose.msra.mxu0 0.0
    %920 = vmatprep.subr.mxu0 0.0
    %921 = vmatpush1.xpose.msra.mxu0 0.0
    %922 = vmatprep.subr.mxu0 0.0
    %923 = vmatpush1.xpose.msra.mxu0 0.0
    %924 = vmatprep.subr.mxu0 0.0
    %925 = vmatpush1.xpose.msra.mxu0 0.0
    %926 = vmatprep.subr.mxu0 0.0
    %927 = vmatpush1.xpose.msra.mxu0 0.0
    %928 = vmatprep.subr.mxu0 0.0
    %929 = vmatpush1.xpose.msra.mxu0 0.0
    %930 = vmatprep.subr.mxu0 0.0
    %931 = vmatpush1.xpose.msra.mxu0 0.0
    %932 = vmatprep.subr.mxu0 0.0
    %933 = vmatpush1.xpose.msra.mxu0 0.0
    %934 = vmatprep.subr.mxu0 0.0
    %935 = vmatpush1.xpose.msra.mxu0 0.0
    %936 = vmatprep.subr.mxu0 0.0
    %937 = vmatpush1.xpose.msra.mxu0 0.0
    %938 = vmatprep.subr.mxu0 0.0
    %939 = vmatpush1.xpose.msra.mxu0 0.0
    %940 = vmatprep.mubr.f32.mxu0 0.0
    %941 = vmatmul.mubr.f32.gmra.mrb[0].mxu0 %v872
    %v942 = vpop.f32.mrb[0].mxu0
    %v943 = vadd.f32 0.0, %v942
    %v944 = vpop.f32.mrb[0].mxu0
    %945 = vdwg.mxu0
    %947 = vrot.lane.b32.xlu0 %v862, 96
    %v948 = vpop.permute.xlu0 %947
    %v949 = vsel %vm166, %v862, 0
    %v951 = vsel %vm166, %v948, 0
    %953 = vmatprep.subr.mxu0 0.0
    %954 = vmatpush1.xpose.msra.mxu0 %v951
    %955 = vmatprep.subr.mxu0 0.0
    %956 = vmatpush1.xpose.msra.mxu0 0.0
    %957 = vmatprep.subr.mxu0 0.0
    %958 = vmatpush1.xpose.msra.mxu0 0.0
    %959 = vmatprep.subr.mxu0 0.0
    %960 = vmatpush1.xpose.msra.mxu0 0.0
    %961 = vmatprep.subr.mxu0 0.0
    %962 = vmatpush1.xpose.msra.mxu0 0.0
    %963 = vmatprep.subr.mxu0 0.0
    %964 = vmatpush1.xpose.msra.mxu0 0.0
    %965 = vmatprep.subr.mxu0 0.0
    %966 = vmatpush1.xpose.msra.mxu0 0.0
    %967 = vmatprep.subr.mxu0 0.0
    %968 = vmatpush1.xpose.msra.mxu0 0.0
    %969 = vmatprep.subr.mxu0 0.0
    %970 = vmatpush1.xpose.msra.mxu0 0.0
    %971 = vmatprep.subr.mxu0 0.0
    %972 = vmatpush1.xpose.msra.mxu0 0.0
    %973 = vmatprep.subr.mxu0 0.0
    %974 = vmatpush1.xpose.msra.mxu0 0.0
    %975 = vmatprep.subr.mxu0 0.0
    %976 = vmatpush1.xpose.msra.mxu0 0.0
    %977 = vmatprep.subr.mxu0 0.0
    %978 = vmatpush1.xpose.msra.mxu0 0.0
    %979 = vmatprep.subr.mxu0 0.0
    %980 = vmatpush1.xpose.msra.mxu0 0.0
    %981 = vmatprep.subr.mxu0 0.0
    %982 = vmatpush1.xpose.msra.mxu0 0.0
    %983 = vmatprep.subr.mxu0 0.0
    %984 = vmatpush1.xpose.msra.mxu0 0.0
    %985 = vmatprep.subr.mxu0 0.0
    %986 = vmatpush1.xpose.msra.mxu0 0.0
    %987 = vmatprep.subr.mxu0 0.0
    %988 = vmatpush1.xpose.msra.mxu0 0.0
    %989 = vmatprep.subr.mxu0 0.0
    %990 = vmatpush1.xpose.msra.mxu0 0.0
    %991 = vmatprep.subr.mxu0 0.0
    %992 = vmatpush1.xpose.msra.mxu0 0.0
    %993 = vmatprep.subr.mxu0 0.0
    %994 = vmatpush1.xpose.msra.mxu0 0.0
    %995 = vmatprep.subr.mxu0 0.0
    %996 = vmatpush1.xpose.msra.mxu0 0.0
    %997 = vmatprep.subr.mxu0 0.0
    %998 = vmatpush1.xpose.msra.mxu0 0.0
    %999 = vmatprep.subr.mxu0 0.0
    %1000 = vmatpush1.xpose.msra.mxu0 0.0
    %1001 = vmatprep.subr.mxu0 0.0
    %1002 = vmatpush1.xpose.msra.mxu0 0.0
    %1003 = vmatprep.subr.mxu0 0.0
    %1004 = vmatpush1.xpose.msra.mxu0 0.0
    %1005 = vmatprep.subr.mxu0 0.0
    %1006 = vmatpush1.xpose.msra.mxu0 0.0
    %1007 = vmatprep.subr.mxu0 0.0
    %1008 = vmatpush1.xpose.msra.mxu0 0.0
    %1009 = vmatprep.subr.mxu0 0.0
    %1010 = vmatpush1.xpose.msra.mxu0 0.0
    %1011 = vmatprep.subr.mxu0 0.0
    %1012 = vmatpush1.xpose.msra.mxu0 0.0
    %1013 = vmatprep.subr.mxu0 0.0
    %1014 = vmatpush1.xpose.msra.mxu0 0.0
    %1015 = vmatprep.subr.mxu0 0.0
    %1016 = vmatpush1.xpose.msra.mxu0 0.0
    %1017 = vmatprep.mubr.f32.mxu0 0.0
    %1018 = vmatmul.mubr.f32.gmra.mrb[0].mxu0 %v949
    %v1019 = vpop.f32.mrb[0].mxu0
    %v1020 = vadd.f32 0.0, %v1019
    %v1021 = vpop.f32.mrb[0].mxu0
    %1022 = vdwg.mxu0
    %1024 = vrot.lane.b32.xlu0 %v863, 96
    %v1025 = vpop.permute.xlu0 %1024
    %v1026 = vsel %vm166, %v863, 0
    %v1028 = vsel %vm166, %v1025, 0
    %1030 = vmatprep.subr.mxu0 0.0
    %1031 = vmatpush1.xpose.msra.mxu0 %v1028
    %1032 = vmatprep.subr.mxu0 0.0
    %1033 = vmatpush1.xpose.msra.mxu0 0.0
    %1034 = vmatprep.subr.mxu0 0.0
    %1035 = vmatpush1.xpose.msra.mxu0 0.0
    %1036 = vmatprep.subr.mxu0 0.0
    %1037 = vmatpush1.xpose.msra.mxu0 0.0
    %1038 = vmatprep.subr.mxu0 0.0
    %1039 = vmatpush1.xpose.msra.mxu0 0.0
    %1040 = vmatprep.subr.mxu0 0.0
    %1041 = vmatpush1.xpose.msra.mxu0 0.0
    %1042 = vmatprep.subr.mxu0 0.0
    %1043 = vmatpush1.xpose.msra.mxu0 0.0
    %1044 = vmatprep.subr.mxu0 0.0
    %1045 = vmatpush1.xpose.msra.mxu0 0.0
    %1046 = vmatprep.subr.mxu0 0.0
    %1047 = vmatpush1.xpose.msra.mxu0 0.0
    %1048 = vmatprep.subr.mxu0 0.0
    %1049 = vmatpush1.xpose.msra.mxu0 0.0
    %1050 = vmatprep.subr.mxu0 0.0
    %1051 = vmatpush1.xpose.msra.mxu0 0.0
    %1052 = vmatprep.subr.mxu0 0.0
    %1053 = vmatpush1.xpose.msra.mxu0 0.0
    %1054 = vmatprep.subr.mxu0 0.0
    %1055 = vmatpush1.xpose.msra.mxu0 0.0
    %1056 = vmatprep.subr.mxu0 0.0
    %1057 = vmatpush1.xpose.msra.mxu0 0.0
    %1058 = vmatprep.subr.mxu0 0.0
    %1059 = vmatpush1.xpose.msra.mxu0 0.0
    %1060 = vmatprep.subr.mxu0 0.0
    %1061 = vmatpush1.xpose.msra.mxu0 0.0
    %1062 = vmatprep.subr.mxu0 0.0
    %1063 = vmatpush1.xpose.msra.mxu0 0.0
    %1064 = vmatprep.subr.mxu0 0.0
    %1065 = vmatpush1.xpose.msra.mxu0 0.0
    %1066 = vmatprep.subr.mxu0 0.0
    %1067 = vmatpush1.xpose.msra.mxu0 0.0
    %1068 = vmatprep.subr.mxu0 0.0
    %1069 = vmatpush1.xpose.msra.mxu0 0.0
    %1070 = vmatprep.subr.mxu0 0.0
    %1071 = vmatpush1.xpose.msra.mxu0 0.0
    %1072 = vmatprep.subr.mxu0 0.0
    %1073 = vmatpush1.xpose.msra.mxu0 0.0
    %1074 = vmatprep.subr.mxu0 0.0
    %1075 = vmatpush1.xpose.msra.mxu0 0.0
    %1076 = vmatprep.subr.mxu0 0.0
    %1077 = vmatpush1.xpose.msra.mxu0 0.0
    %1078 = vmatprep.subr.mxu0 0.0
    %1079 = vmatpush1.xpose.msra.mxu0 0.0
    %1080 = vmatprep.subr.mxu0 0.0
    %1081 = vmatpush1.xpose.msra.mxu0 0.0
    %1082 = vmatprep.subr.mxu0 0.0
    %1083 = vmatpush1.xpose.msra.mxu0 0.0
    %1084 = vmatprep.subr.mxu0 0.0
    %1085 = vmatpush1.xpose.msra.mxu0 0.0
    %1086 = vmatprep.subr.mxu0 0.0
    %1087 = vmatpush1.xpose.msra.mxu0 0.0
    %1088 = vmatprep.subr.mxu0 0.0
    %1089 = vmatpush1.xpose.msra.mxu0 0.0
    %1090 = vmatprep.subr.mxu0 0.0
    %1091 = vmatpush1.xpose.msra.mxu0 0.0
    %1092 = vmatprep.subr.mxu0 0.0
    %1093 = vmatpush1.xpose.msra.mxu0 0.0
    %1094 = vmatprep.mubr.f32.mxu0 0.0
    %1095 = vmatmul.mubr.f32.gmra.mrb[0].mxu0 %v1026
    %v1096 = vpop.f32.mrb[0].mxu0
    %v1097 = vadd.f32 0.0, %v1096
    %v1098 = vpop.f32.mrb[0].mxu0
    %1099 = vdwg.mxu0
    %1101 = vrot.lane.b32.xlu0 %v864, 96
    %v1102 = vpop.permute.xlu0 %1101
    %v1103 = vsel %vm166, %v864, 0
    %v1105 = vsel %vm166, %v1102, 0
    %1107 = vmatprep.subr.mxu0 0.0
    %1108 = vmatpush1.xpose.msra.mxu0 %v1105
    %1109 = vmatprep.subr.mxu0 0.0
    %1110 = vmatpush1.xpose.msra.mxu0 0.0
    %1111 = vmatprep.subr.mxu0 0.0
    %1112 = vmatpush1.xpose.msra.mxu0 0.0
    %1113 = vmatprep.subr.mxu0 0.0
    %1114 = vmatpush1.xpose.msra.mxu0 0.0
    %1115 = vmatprep.subr.mxu0 0.0
    %1116 = vmatpush1.xpose.msra.mxu0 0.0
    %1117 = vmatprep.subr.mxu0 0.0
    %1118 = vmatpush1.xpose.msra.mxu0 0.0
    %1119 = vmatprep.subr.mxu0 0.0
    %1120 = vmatpush1.xpose.msra.mxu0 0.0
    %1121 = vmatprep.subr.mxu0 0.0
    %1122 = vmatpush1.xpose.msra.mxu0 0.0
    %1123 = vmatprep.subr.mxu0 0.0
    %1124 = vmatpush1.xpose.msra.mxu0 0.0
    %1125 = vmatprep.subr.mxu0 0.0
    %1126 = vmatpush1.xpose.msra.mxu0 0.0
    %1127 = vmatprep.subr.mxu0 0.0
    %1128 = vmatpush1.xpose.msra.mxu0 0.0
    %1129 = vmatprep.subr.mxu0 0.0
    %1130 = vmatpush1.xpose.msra.mxu0 0.0
    %1131 = vmatprep.subr.mxu0 0.0
    %1132 = vmatpush1.xpose.msra.mxu0 0.0
    %1133 = vmatprep.subr.mxu0 0.0
    %1134 = vmatpush1.xpose.msra.mxu0 0.0
    %1135 = vmatprep.subr.mxu0 0.0
    %1136 = vmatpush1.xpose.msra.mxu0 0.0
    %1137 = vmatprep.subr.mxu0 0.0
    %1138 = vmatpush1.xpose.msra.mxu0 0.0
    %1139 = vmatprep.subr.mxu0 0.0
    %1140 = vmatpush1.xpose.msra.mxu0 0.0
    %1141 = vmatprep.subr.mxu0 0.0
    %1142 = vmatpush1.xpose.msra.mxu0 0.0
    %1143 = vmatprep.subr.mxu0 0.0
    %1144 = vmatpush1.xpose.msra.mxu0 0.0
    %1145 = vmatprep.subr.mxu0 0.0
    %1146 = vmatpush1.xpose.msra.mxu0 0.0
    %1147 = vmatprep.subr.mxu0 0.0
    %1148 = vmatpush1.xpose.msra.mxu0 0.0
    %1149 = vmatprep.subr.mxu0 0.0
    %1150 = vmatpush1.xpose.msra.mxu0 0.0
    %1151 = vmatprep.subr.mxu0 0.0
    %1152 = vmatpush1.xpose.msra.mxu0 0.0
    %1153 = vmatprep.subr.mxu0 0.0
    %1154 = vmatpush1.xpose.msra.mxu0 0.0
    %1155 = vmatprep.subr.mxu0 0.0
    %1156 = vmatpush1.xpose.msra.mxu0 0.0
    %1157 = vmatprep.subr.mxu0 0.0
    %1158 = vmatpush1.xpose.msra.mxu0 0.0
    %1159 = vmatprep.subr.mxu0 0.0
    %1160 = vmatpush1.xpose.msra.mxu0 0.0
    %1161 = vmatprep.subr.mxu0 0.0
    %1162 = vmatpush1.xpose.msra.mxu0 0.0
    %1163 = vmatprep.subr.mxu0 0.0
    %1164 = vmatpush1.xpose.msra.mxu0 0.0
    %1165 = vmatprep.subr.mxu0 0.0
    %1166 = vmatpush1.xpose.msra.mxu0 0.0
    %1167 = vmatprep.subr.mxu0 0.0
    %1168 = vmatpush1.xpose.msra.mxu0 0.0
    %1169 = vmatprep.subr.mxu0 0.0
    %1170 = vmatpush1.xpose.msra.mxu0 0.0
    %1171 = vmatprep.mubr.f32.mxu0 0.0
    %1172 = vmatmul.mubr.f32.gmra.mrb[0].mxu0 %v1103
    %v1173 = vpop.f32.mrb[0].mxu0
    %v1174 = vadd.f32 0.0, %v1173
    %v1175 = vpop.f32.mrb[0].mxu0
    %1176 = vdwg.mxu0
    %1178 = vrot.lane.b32.xlu0 %v865, 96
    %v1179 = vpop.permute.xlu0 %1178
    %v1180 = vsel %vm166, %v865, 0
    %v1182 = vsel %vm166, %v1179, 0
    %1184 = vmatprep.subr.mxu0 0.0
    %1185 = vmatpush1.xpose.msra.mxu0 %v1182
    %1186 = vmatprep.subr.mxu0 0.0
    %1187 = vmatpush1.xpose.msra.mxu0 0.0
    %1188 = vmatprep.subr.mxu0 0.0
    %1189 = vmatpush1.xpose.msra.mxu0 0.0
    %1190 = vmatprep.subr.mxu0 0.0
    %1191 = vmatpush1.xpose.msra.mxu0 0.0
    %1192 = vmatprep.subr.mxu0 0.0
    %1193 = vmatpush1.xpose.msra.mxu0 0.0
    %1194 = vmatprep.subr.mxu0 0.0
    %1195 = vmatpush1.xpose.msra.mxu0 0.0
    %1196 = vmatprep.subr.mxu0 0.0
    %1197 = vmatpush1.xpose.msra.mxu0 0.0
    %1198 = vmatprep.subr.mxu0 0.0
    %1199 = vmatpush1.xpose.msra.mxu0 0.0
    %1200 = vmatprep.subr.mxu0 0.0
    %1201 = vmatpush1.xpose.msra.mxu0 0.0
    %1202 = vmatprep.subr.mxu0 0.0
    %1203 = vmatpush1.xpose.msra.mxu0 0.0
    %1204 = vmatprep.subr.mxu0 0.0
    %1205 = vmatpush1.xpose.msra.mxu0 0.0
    %1206 = vmatprep.subr.mxu0 0.0
    %1207 = vmatpush1.xpose.msra.mxu0 0.0
    %1208 = vmatprep.subr.mxu0 0.0
    %1209 = vmatpush1.xpose.msra.mxu0 0.0
    %1210 = vmatprep.subr.mxu0 0.0
    %1211 = vmatpush1.xpose.msra.mxu0 0.0
    %1212 = vmatprep.subr.mxu0 0.0
    %1213 = vmatpush1.xpose.msra.mxu0 0.0
    %1214 = vmatprep.subr.mxu0 0.0
    %1215 = vmatpush1.xpose.msra.mxu0 0.0
    %1216 = vmatprep.subr.mxu0 0.0
    %1217 = vmatpush1.xpose.msra.mxu0 0.0
    %1218 = vmatprep.subr.mxu0 0.0
    %1219 = vmatpush1.xpose.msra.mxu0 0.0
    %1220 = vmatprep.subr.mxu0 0.0
    %1221 = vmatpush1.xpose.msra.mxu0 0.0
    %1222 = vmatprep.subr.mxu0 0.0
    %1223 = vmatpush1.xpose.msra.mxu0 0.0
    %1224 = vmatprep.subr.mxu0 0.0
    %1225 = vmatpush1.xpose.msra.mxu0 0.0
    %1226 = vmatprep.subr.mxu0 0.0
    %1227 = vmatpush1.xpose.msra.mxu0 0.0
    %1228 = vmatprep.subr.mxu0 0.0
    %1229 = vmatpush1.xpose.msra.mxu0 0.0
    %1230 = vmatprep.subr.mxu0 0.0
    %1231 = vmatpush1.xpose.msra.mxu0 0.0
    %1232 = vmatprep.subr.mxu0 0.0
    %1233 = vmatpush1.xpose.msra.mxu0 0.0
    %1234 = vmatprep.subr.mxu0 0.0
    %1235 = vmatpush1.xpose.msra.mxu0 0.0
    %1236 = vmatprep.subr.mxu0 0.0
    %1237 = vmatpush1.xpose.msra.mxu0 0.0
    %1238 = vmatprep.subr.mxu0 0.0
    %1239 = vmatpush1.xpose.msra.mxu0 0.0
    %1240 = vmatprep.subr.mxu0 0.0
    %1241 = vmatpush1.xpose.msra.mxu0 0.0
    %1242 = vmatprep.subr.mxu0 0.0
    %1243 = vmatpush1.xpose.msra.mxu0 0.0
    %1244 = vmatprep.subr.mxu0 0.0
    %1245 = vmatpush1.xpose.msra.mxu0 0.0
    %1246 = vmatprep.subr.mxu0 0.0
    %1247 = vmatpush1.xpose.msra.mxu0 0.0
    %1248 = vmatprep.mubr.f32.mxu0 0.0
    %1249 = vmatmul.mubr.f32.gmra.mrb[0].mxu0 %v1180
    %v1250 = vpop.f32.mrb[0].mxu0
    %v1251 = vadd.f32 0.0, %v1250
    %v1252 = vpop.f32.mrb[0].mxu0
    %1253 = vdwg.mxu0
    %1255 = vrot.lane.b32.xlu0 %v866, 96
    %v1256 = vpop.permute.xlu0 %1255
    %v1257 = vsel %vm166, %v866, 0
    %v1259 = vsel %vm166, %v1256, 0
    %1261 = vmatprep.subr.mxu0 0.0
    %1262 = vmatpush1.xpose.msra.mxu0 %v1259
    %1263 = vmatprep.subr.mxu0 0.0
    %1264 = vmatpush1.xpose.msra.mxu0 0.0
    %1265 = vmatprep.subr.mxu0 0.0
    %1266 = vmatpush1.xpose.msra.mxu0 0.0
    %1267 = vmatprep.subr.mxu0 0.0
    %1268 = vmatpush1.xpose.msra.mxu0 0.0
    %1269 = vmatprep.subr.mxu0 0.0
    %1270 = vmatpush1.xpose.msra.mxu0 0.0
    %1271 = vmatprep.subr.mxu0 0.0
    %1272 = vmatpush1.xpose.msra.mxu0 0.0
    %1273 = vmatprep.subr.mxu0 0.0
    %1274 = vmatpush1.xpose.msra.mxu0 0.0
    %1275 = vmatprep.subr.mxu0 0.0
    %1276 = vmatpush1.xpose.msra.mxu0 0.0
    %1277 = vmatprep.subr.mxu0 0.0
    %1278 = vmatpush1.xpose.msra.mxu0 0.0
    %1279 = vmatprep.subr.mxu0 0.0
    %1280 = vmatpush1.xpose.msra.mxu0 0.0
    %1281 = vmatprep.subr.mxu0 0.0
    %1282 = vmatpush1.xpose.msra.mxu0 0.0
    %1283 = vmatprep.subr.mxu0 0.0
    %1284 = vmatpush1.xpose.msra.mxu0 0.0
    %1285 = vmatprep.subr.mxu0 0.0
    %1286 = vmatpush1.xpose.msra.mxu0 0.0
    %1287 = vmatprep.subr.mxu0 0.0
    %1288 = vmatpush1.xpose.msra.mxu0 0.0
    %1289 = vmatprep.subr.mxu0 0.0
    %1290 = vmatpush1.xpose.msra.mxu0 0.0
    %1291 = vmatprep.subr.mxu0 0.0
    %1292 = vmatpush1.xpose.msra.mxu0 0.0
    %1293 = vmatprep.subr.mxu0 0.0
    %1294 = vmatpush1.xpose.msra.mxu0 0.0
    %1295 = vmatprep.subr.mxu0 0.0
    %1296 = vmatpush1.xpose.msra.mxu0 0.0
    %1297 = vmatprep.subr.mxu0 0.0
    %1298 = vmatpush1.xpose.msra.mxu0 0.0
    %1299 = vmatprep.subr.mxu0 0.0
    %1300 = vmatpush1.xpose.msra.mxu0 0.0
    %1301 = vmatprep.subr.mxu0 0.0
    %1302 = vmatpush1.xpose.msra.mxu0 0.0
    %1303 = vmatprep.subr.mxu0 0.0
    %1304 = vmatpush1.xpose.msra.mxu0 0.0
    %1305 = vmatprep.subr.mxu0 0.0
    %1306 = vmatpush1.xpose.msra.mxu0 0.0
    %1307 = vmatprep.subr.mxu0 0.0
    %1308 = vmatpush1.xpose.msra.mxu0 0.0
    %1309 = vmatprep.subr.mxu0 0.0
    %1310 = vmatpush1.xpose.msra.mxu0 0.0
    %1311 = vmatprep.subr.mxu0 0.0
    %1312 = vmatpush1.xpose.msra.mxu0 0.0
    %1313 = vmatprep.subr.mxu0 0.0
    %1314 = vmatpush1.xpose.msra.mxu0 0.0
    %1315 = vmatprep.subr.mxu0 0.0
    %1316 = vmatpush1.xpose.msra.mxu0 0.0
    %1317 = vmatprep.subr.mxu0 0.0
    %1318 = vmatpush1.xpose.msra.mxu0 0.0
    %1319 = vmatprep.subr.mxu0 0.0
    %1320 = vmatpush1.xpose.msra.mxu0 0.0
    %1321 = vmatprep.subr.mxu0 0.0
    %1322 = vmatpush1.xpose.msra.mxu0 0.0
    %1323 = vmatprep.subr.mxu0 0.0
    %1324 = vmatpush1.xpose.msra.mxu0 0.0
    %1325 = vmatprep.mubr.f32.mxu0 0.0
    %1326 = vmatmul.mubr.f32.gmra.mrb[0].mxu0 %v1257
    %v1327 = vpop.f32.mrb[0].mxu0
    %v1328 = vadd.f32 0.0, %v1327
    %v1329 = vpop.f32.mrb[0].mxu0
    %1330 = vdwg.mxu0
    %1332 = vrot.lane.b32.xlu0 %v867, 96
    %v1333 = vpop.permute.xlu0 %1332
    %v1334 = vsel %vm166, %v867, 0
    %v1336 = vsel %vm166, %v1333, 0
    %1338 = vmatprep.subr.mxu0 0.0
    %1339 = vmatpush1.xpose.msra.mxu0 %v1336
    %1340 = vmatprep.subr.mxu0 0.0
    %1341 = vmatpush1.xpose.msra.mxu0 0.0
    %1342 = vmatprep.subr.mxu0 0.0
    %1343 = vmatpush1.xpose.msra.mxu0 0.0
    %1344 = vmatprep.subr.mxu0 0.0
    %1345 = vmatpush1.xpose.msra.mxu0 0.0
    %1346 = vmatprep.subr.mxu0 0.0
    %1347 = vmatpush1.xpose.msra.mxu0 0.0
    %1348 = vmatprep.subr.mxu0 0.0
    %1349 = vmatpush1.xpose.msra.mxu0 0.0
    %1350 = vmatprep.subr.mxu0 0.0
    %1351 = vmatpush1.xpose.msra.mxu0 0.0
    %1352 = vmatprep.subr.mxu0 0.0
    %1353 = vmatpush1.xpose.msra.mxu0 0.0
    %1354 = vmatprep.subr.mxu0 0.0
    %1355 = vmatpush1.xpose.msra.mxu0 0.0
    %1356 = vmatprep.subr.mxu0 0.0
    %1357 = vmatpush1.xpose.msra.mxu0 0.0
    %1358 = vmatprep.subr.mxu0 0.0
    %1359 = vmatpush1.xpose.msra.mxu0 0.0
    %1360 = vmatprep.subr.mxu0 0.0
    %1361 = vmatpush1.xpose.msra.mxu0 0.0
    %1362 = vmatprep.subr.mxu0 0.0
    %1363 = vmatpush1.xpose.msra.mxu0 0.0
    %1364 = vmatprep.subr.mxu0 0.0
    %1365 = vmatpush1.xpose.msra.mxu0 0.0
    %1366 = vmatprep.subr.mxu0 0.0
    %1367 = vmatpush1.xpose.msra.mxu0 0.0
    %1368 = vmatprep.subr.mxu0 0.0
    %1369 = vmatpush1.xpose.msra.mxu0 0.0
    %1370 = vmatprep.subr.mxu0 0.0
    %1371 = vmatpush1.xpose.msra.mxu0 0.0
    %1372 = vmatprep.subr.mxu0 0.0
    %1373 = vmatpush1.xpose.msra.mxu0 0.0
    %1374 = vmatprep.subr.mxu0 0.0
    %1375 = vmatpush1.xpose.msra.mxu0 0.0
    %1376 = vmatprep.subr.mxu0 0.0
    %1377 = vmatpush1.xpose.msra.mxu0 0.0
    %1378 = vmatprep.subr.mxu0 0.0
    %1379 = vmatpush1.xpose.msra.mxu0 0.0
    %1380 = vmatprep.subr.mxu0 0.0
    %1381 = vmatpush1.xpose.msra.mxu0 0.0
    %1382 = vmatprep.subr.mxu0 0.0
    %1383 = vmatpush1.xpose.msra.mxu0 0.0
    %1384 = vmatprep.subr.mxu0 0.0
    %1385 = vmatpush1.xpose.msra.mxu0 0.0
    %1386 = vmatprep.subr.mxu0 0.0
    %1387 = vmatpush1.xpose.msra.mxu0 0.0
    %1388 = vmatprep.subr.mxu0 0.0
    %1389 = vmatpush1.xpose.msra.mxu0 0.0
    %1390 = vmatprep.subr.mxu0 0.0
    %1391 = vmatpush1.xpose.msra.mxu0 0.0
    %1392 = vmatprep.subr.mxu0 0.0
    %1393 = vmatpush1.xpose.msra.mxu0 0.0
    %1394 = vmatprep.subr.mxu0 0.0
    %1395 = vmatpush1.xpose.msra.mxu0 0.0
    %1396 = vmatprep.subr.mxu0 0.0
    %1397 = vmatpush1.xpose.msra.mxu0 0.0
    %1398 = vmatprep.subr.mxu0 0.0
    %1399 = vmatpush1.xpose.msra.mxu0 0.0
    %1400 = vmatprep.subr.mxu0 0.0
    %1401 = vmatpush1.xpose.msra.mxu0 0.0
    %1402 = vmatprep.mubr.f32.mxu0 0.0
    %1403 = vmatmul.mubr.f32.gmra.mrb[0].mxu0 %v1334
    %v1404 = vpop.f32.mrb[0].mxu0
    %v1405 = vadd.f32 0.0, %v1404
    %v1406 = vpop.f32.mrb[0].mxu0
    %1407 = vdwg.mxu0
    %1409 = vrot.lane.b32.xlu0 %v868, 96
    %v1410 = vpop.permute.xlu0 %1409
    %v1411 = vsel %vm166, %v868, 0
    %v1413 = vsel %vm166, %v1410, 0
    %1415 = vmatprep.subr.mxu0 0.0
    %1416 = vmatpush1.xpose.msra.mxu0 %v1413
    %1417 = vmatprep.subr.mxu0 0.0
    %1418 = vmatpush1.xpose.msra.mxu0 0.0
    %1419 = vmatprep.subr.mxu0 0.0
    %1420 = vmatpush1.xpose.msra.mxu0 0.0
    %1421 = vmatprep.subr.mxu0 0.0
    %1422 = vmatpush1.xpose.msra.mxu0 0.0
    %1423 = vmatprep.subr.mxu0 0.0
    %1424 = vmatpush1.xpose.msra.mxu0 0.0
    %1425 = vmatprep.subr.mxu0 0.0
    %1426 = vmatpush1.xpose.msra.mxu0 0.0
    %1427 = vmatprep.subr.mxu0 0.0
    %1428 = vmatpush1.xpose.msra.mxu0 0.0
    %1429 = vmatprep.subr.mxu0 0.0
    %1430 = vmatpush1.xpose.msra.mxu0 0.0
    %1431 = vmatprep.subr.mxu0 0.0
    %1432 = vmatpush1.xpose.msra.mxu0 0.0
    %1433 = vmatprep.subr.mxu0 0.0
    %1434 = vmatpush1.xpose.msra.mxu0 0.0
    %1435 = vmatprep.subr.mxu0 0.0
    %1436 = vmatpush1.xpose.msra.mxu0 0.0
    %1437 = vmatprep.subr.mxu0 0.0
    %1438 = vmatpush1.xpose.msra.mxu0 0.0
    %1439 = vmatprep.subr.mxu0 0.0
    %1440 = vmatpush1.xpose.msra.mxu0 0.0
    %1441 = vmatprep.subr.mxu0 0.0
    %1442 = vmatpush1.xpose.msra.mxu0 0.0
    %1443 = vmatprep.subr.mxu0 0.0
    %1444 = vmatpush1.xpose.msra.mxu0 0.0
    %1445 = vmatprep.subr.mxu0 0.0
    %1446 = vmatpush1.xpose.msra.mxu0 0.0
    %1447 = vmatprep.subr.mxu0 0.0
    %1448 = vmatpush1.xpose.msra.mxu0 0.0
    %1449 = vmatprep.subr.mxu0 0.0
    %1450 = vmatpush1.xpose.msra.mxu0 0.0
    %1451 = vmatprep.subr.mxu0 0.0
    %1452 = vmatpush1.xpose.msra.mxu0 0.0
    %1453 = vmatprep.subr.mxu0 0.0
    %1454 = vmatpush1.xpose.msra.mxu0 0.0
    %1455 = vmatprep.subr.mxu0 0.0
    %1456 = vmatpush1.xpose.msra.mxu0 0.0
    %1457 = vmatprep.subr.mxu0 0.0
    %1458 = vmatpush1.xpose.msra.mxu0 0.0
    %1459 = vmatprep.subr.mxu0 0.0
    %1460 = vmatpush1.xpose.msra.mxu0 0.0
    %1461 = vmatprep.subr.mxu0 0.0
    %1462 = vmatpush1.xpose.msra.mxu0 0.0
    %1463 = vmatprep.subr.mxu0 0.0
    %1464 = vmatpush1.xpose.msra.mxu0 0.0
    %1465 = vmatprep.subr.mxu0 0.0
    %1466 = vmatpush1.xpose.msra.mxu0 0.0
    %1467 = vmatprep.subr.mxu0 0.0
    %1468 = vmatpush1.xpose.msra.mxu0 0.0
    %1469 = vmatprep.subr.mxu0 0.0
    %1470 = vmatpush1.xpose.msra.mxu0 0.0
    %1471 = vmatprep.subr.mxu0 0.0
    %1472 = vmatpush1.xpose.msra.mxu0 0.0
    %1473 = vmatprep.subr.mxu0 0.0
    %1474 = vmatpush1.xpose.msra.mxu0 0.0
    %1475 = vmatprep.subr.mxu0 0.0
    %1476 = vmatpush1.xpose.msra.mxu0 0.0
    %1477 = vmatprep.subr.mxu0 0.0
    %1478 = vmatpush1.xpose.msra.mxu0 0.0
    %1479 = vmatprep.mubr.f32.mxu0 0.0
    %1480 = vmatmul.mubr.f32.gmra.mrb[0].mxu0 %v1411
    %v1481 = vpop.f32.mrb[0].mxu0
    %v1482 = vadd.f32 0.0, %v1481
    %v1483 = vpop.f32.mrb[0].mxu0
    %1484 = vdwg.mxu0
    %v1485 = vmul.f32 %v943, 0.17677669
    %v1486 = vmul.f32 %v1020, 0.17677669
    %v1487 = vmul.f32 %v1097, 0.17677669
    %v1488 = vmul.f32 %v1174, 0.17677669
    %v1489 = vmul.f32 %v1251, 0.17677669
    %v1490 = vmul.f32 %v1328, 0.17677669
    %v1491 = vmul.f32 %v1405, 0.17677669
    %v1492 = vmul.f32 %v1482, 0.17677669
    %v1493 = vcombine.high %v305, %v305
    %v1495 = vunpack.c.l.s4 1966171168
    %v1496 = vunpack.c.0.s8 %v1495
    %v1497 = vlaneseq
    %v1498 = vshrl.u32 %v1497, 7
    %v1499 = vsub.s32 %v1496, %v1498
    %v1500 = vrot.slane %v305, %v1499
    %v1502 = vunpack.c.l.s4 1966171168
    %v1503 = vunpack.c.0.s8 %v1502
    %v1504 = vlaneseq
    %v1505 = vshrl.u32 %v1504, 7
    %v1506 = vsub.s32 %v1503, %v1505
    %v1507 = vrot.slane %v1493, %v1506
    %v1508 = vcombine.high %v1500, %v1500
    %v1509 = vcombine.high %v1507, %v1507
    %v1511 = vunpack.c.l.s4 1966171168
    %v1512 = vunpack.c.0.s8 %v1511
    %v1513 = vlaneseq
    %v1514 = vshrl.u32 %v1513, 7
    %v1515 = vsub.s32 %v1512, %v1514
    %v1516 = vrot.slane %v1500, %v1515
    %v1518 = vunpack.c.l.s4 1966171168
    %v1519 = vunpack.c.0.s8 %v1518
    %v1520 = vlaneseq
    %v1521 = vshrl.u32 %v1520, 7
    %v1522 = vsub.s32 %v1519, %v1521
    %v1523 = vrot.slane %v1507, %v1522
    %v1525 = vunpack.c.l.s4 1966171168
    %v1526 = vunpack.c.0.s8 %v1525
    %v1527 = vlaneseq
    %v1528 = vshrl.u32 %v1527, 7
    %v1529 = vsub.s32 %v1526, %v1528
    %v1530 = vrot.slane %v1508, %v1529
    %v1532 = vunpack.c.l.s4 1966171168
    %v1533 = vunpack.c.0.s8 %v1532
    %v1534 = vlaneseq
    %v1535 = vshrl.u32 %v1534, 7
    %v1536 = vsub.s32 %v1533, %v1535
    %v1537 = vrot.slane %v1509, %v1536
    %v1538 = vcombine.high %v1516, %v1516
    %v1539 = vcombine.high %v1523, %v1523
    %v1540 = vcombine.high %v1530, %v1530
    %v1541 = vcombine.high %v1537, %v1537
    %v1542 = vlaneseq
    %v1543 = vshrl.u32 %v1542, 7
    %v1544 = vlaneseq
    %v1545 = vand.u32 %v1544, 127
    %v1546 = vlaneseq
    %v1547 = vshrl.u32 %v1546, 7
    %v1548 = vsub.s32 0, %v1547
    %v1549 = vrot.slane %v1516, %v1548
    %v1550 = vlaneseq
    %v1551 = vshrl.u32 %v1550, 7
    %v1552 = vsub.s32 0, %v1551
    %v1553 = vrot.slane %v1530, %v1552
    %v1554 = vlaneseq
    %v1555 = vshrl.u32 %v1554, 7
    %v1556 = vsub.s32 0, %v1555
    %v1557 = vrot.slane %v1538, %v1556
    %v1558 = vlaneseq
    %v1559 = vshrl.u32 %v1558, 7
    %v1560 = vsub.s32 0, %v1559
    %v1561 = vrot.slane %v1540, %v1560
    %v1562 = vlaneseq
    %v1563 = vshrl.u32 %v1562, 7
    %v1564 = vsub.s32 0, %v1563
    %v1565 = vrot.slane %v1523, %v1564
    %v1566 = vlaneseq
    %v1567 = vshrl.u32 %v1566, 7
    %v1568 = vsub.s32 0, %v1567
    %v1569 = vrot.slane %v1537, %v1568
    %v1570 = vlaneseq
    %v1571 = vshrl.u32 %v1570, 7
    %v1572 = vsub.s32 0, %v1571
    %v1573 = vrot.slane %v1539, %v1572
    %v1574 = vlaneseq
    %v1575 = vshrl.u32 %v1574, 7
    %v1576 = vsub.s32 0, %v1575
    %v1577 = vrot.slane %v1541, %v1576
    %1578 = vset.pattern.permute.xlu0 0
    %1579 = vperm.xlu0 %1578, %v1549
    %v1580 = vpop.permute.xlu0 %1579
    %1581 = vset.pattern.permute.xlu0 0
    %1582 = vperm.xlu0 %1581, %v1553
    %v1583 = vpop.permute.xlu0 %1582
    %1584 = vset.pattern.permute.xlu0 0
    %1585 = vperm.xlu0 %1584, %v1557
    %v1586 = vpop.permute.xlu0 %1585
    %1587 = vset.pattern.permute.xlu0 0
    %1588 = vperm.xlu0 %1587, %v1561
    %v1589 = vpop.permute.xlu0 %1588
    %1590 = vset.pattern.permute.xlu0 0
    %1591 = vperm.xlu0 %1590, %v1565
    %v1592 = vpop.permute.xlu0 %1591
    %1593 = vset.pattern.permute.xlu0 0
    %1594 = vperm.xlu0 %1593, %v1569
    %v1595 = vpop.permute.xlu0 %1594
    %1596 = vset.pattern.permute.xlu0 0
    %1597 = vperm.xlu0 %1596, %v1573
    %v1598 = vpop.permute.xlu0 %1597
    %1599 = vset.pattern.permute.xlu0 0
    %1600 = vperm.xlu0 %1599, %v1577
    %v1601 = vpop.permute.xlu0 %1600
    %vm1602 = vcmp.lt.s32.totalorder %v1543, %v1580
    %vm1603 = vcmp.lt.s32.totalorder %v1543, %v1583
    %vm1604 = vcmp.lt.s32.totalorder %v1543, %v1586
    %vm1605 = vcmp.lt.s32.totalorder %v1543, %v1589
    %vm1606 = vcmp.lt.s32.totalorder %v1543, %v1592
    %vm1607 = vcmp.lt.s32.totalorder %v1543, %v1595
    %vm1608 = vcmp.lt.s32.totalorder %v1543, %v1598
    %vm1609 = vcmp.lt.s32.totalorder %v1543, %v1601
    %vm1610 = vcmp.lt.s32.totalorder %v1545, %v1580
    %vm1611 = vcmp.lt.s32.totalorder %v1545, %v1583
    %vm1612 = vcmp.lt.s32.totalorder %v1545, %v1586
    %vm1613 = vcmp.lt.s32.totalorder %v1545, %v1589
    %vm1614 = vcmp.lt.s32.totalorder %v1545, %v1592
    %vm1615 = vcmp.lt.s32.totalorder %v1545, %v1595
    %vm1616 = vcmp.lt.s32.totalorder %v1545, %v1598
    %vm1617 = vcmp.lt.s32.totalorder %v1545, %v1601
    %vm1618 = vmand %vm1602, %vm1610
    %vm1619 = vmand %vm1603, %vm1611
    %vm1620 = vmand %vm1604, %vm1612
    %vm1621 = vmand %vm1605, %vm1613
    %vm1622 = vmand %vm1606, %vm1614
    %vm1623 = vmand %vm1607, %vm1615
    %vm1624 = vmand %vm1608, %vm1616
    %vm1625 = vmand %vm1609, %vm1617
    %v1626 = vsel %vm1618, %v1485, -1e+10
    %v1627 = vsel %vm1619, %v1486, -1e+10
    %v1628 = vsel %vm1620, %v1487, -1e+10
    %v1629 = vsel %vm1621, %v1488, -1e+10
    %v1630 = vsel %vm1622, %v1489, -1e+10
    %v1631 = vsel %vm1623, %v1490, -1e+10
    %v1632 = vsel %vm1624, %v1491, -1e+10
    %v1633 = vsel %vm1625, %v1492, -1e+10
    %vm1634 = vcmask 64512
    %v1635 = vsel %vm1634, %v1626, -inf
    %1636 = vmax.xlane.f32.xlu0 %v1635
    %v1637 = vpop.xlane.xlu0 %1636
    %v1638 = vsel %vm1634, %v1627, -inf
    %1639 = vmax.xlane.f32.xlu0 %v1638
    %v1640 = vpop.xlane.xlu0 %1639
    %v1641 = vsel %vm1634, %v1628, -inf
    %1642 = vmax.xlane.f32.xlu0 %v1641
    %v1643 = vpop.xlane.xlu0 %1642
    %v1644 = vsel %vm1634, %v1629, -inf
    %1645 = vmax.xlane.f32.xlu0 %v1644
    %v1646 = vpop.xlane.xlu0 %1645
    %v1647 = vsel %vm1634, %v1630, -inf
    %1648 = vmax.xlane.f32.xlu0 %v1647
    %v1649 = vpop.xlane.xlu0 %1648
    %v1650 = vsel %vm1634, %v1631, -inf
    %1651 = vmax.xlane.f32.xlu0 %v1650
    %v1652 = vpop.xlane.xlu0 %1651
    %v1653 = vsel %vm1634, %v1632, -inf
    %1654 = vmax.xlane.f32.xlu0 %v1653
    %v1655 = vpop.xlane.xlu0 %1654
    %v1656 = vsel %vm1634, %v1633, -inf
    %1657 = vmax.xlane.f32.xlu0 %v1656
    %v1658 = vpop.xlane.xlu0 %1657
    %v1659 = vsub.f32 %v1626, %v1637
    %v1660 = vsub.f32 %v1627, %v1640
    %v1661 = vsub.f32 %v1628, %v1643
    %v1662 = vsub.f32 %v1629, %v1646
    %v1663 = vsub.f32 %v1630, %v1649
    %v1664 = vsub.f32 %v1631, %v1652
    %v1665 = vsub.f32 %v1632, %v1655
    %v1666 = vsub.f32 %v1633, %v1658
    %v1667 = vmul.f32 %v1659, 1.442695
    %v1668 = vpow.pop %v1667
    %v1669 = vmul.f32 %v1660, 1.442695
    %v1670 = vpow.pop %v1669
    %v1671 = vmul.f32 %v1661, 1.442695
    %v1672 = vpow.pop %v1671
    %v1673 = vmul.f32 %v1662, 1.442695
    %v1674 = vpow.pop %v1673
    %v1675 = vmul.f32 %v1663, 1.442695
    %v1676 = vpow.pop %v1675
    %v1677 = vmul.f32 %v1664, 1.442695
    %v1678 = vpow.pop %v1677
    %v1679 = vmul.f32 %v1665, 1.442695
    %v1680 = vpow.pop %v1679
    %v1681 = vmul.f32 %v1666, 1.442695
    %v1682 = vpow.pop %v1681
    %v1683 = vsel %vm1634, %v1668, 0.0
    %1684 = vadd.xlane.f32.xlu0 %v1683
    %v1685 = vpop.xlane.xlu0 %1684
    %v1686 = vsel %vm1634, %v1670, 0.0
    %1687 = vadd.xlane.f32.xlu0 %v1686
    %v1688 = vpop.xlane.xlu0 %1687
    %v1689 = vsel %vm1634, %v1672, 0.0
    %1690 = vadd.xlane.f32.xlu0 %v1689
    %v1691 = vpop.xlane.xlu0 %1690
    %v1692 = vsel %vm1634, %v1674, 0.0
    %1693 = vadd.xlane.f32.xlu0 %v1692
    %v1694 = vpop.xlane.xlu0 %1693
    %v1695 = vsel %vm1634, %v1676, 0.0
    %1696 = vadd.xlane.f32.xlu0 %v1695
    %v1697 = vpop.xlane.xlu0 %1696
    %v1698 = vsel %vm1634, %v1678, 0.0
    %1699 = vadd.xlane.f32.xlu0 %v1698
    %v1700 = vpop.xlane.xlu0 %1699
    %v1701 = vsel %vm1634, %v1680, 0.0
    %1702 = vadd.xlane.f32.xlu0 %v1701
    %v1703 = vpop.xlane.xlu0 %1702
    %v1704 = vsel %vm1634, %v1682, 0.0
    %1705 = vadd.xlane.f32.xlu0 %v1704
    %v1706 = vpop.xlane.xlu0 %1705
    %v1707 = vrcp.pop %v1685
    %v1708 = vmul.f32 %v1668, %v1707
    %v1709 = vrcp.pop %v1688
    %v1710 = vmul.f32 %v1670, %v1709
    %v1711 = vrcp.pop %v1691
    %v1712 = vmul.f32 %v1672, %v1711
    %v1713 = vrcp.pop %v1694
    %v1714 = vmul.f32 %v1674, %v1713
    %v1715 = vrcp.pop %v1697
    %v1716 = vmul.f32 %v1676, %v1715
    %v1717 = vrcp.pop %v1700
    %v1718 = vmul.f32 %v1678, %v1717
    %v1719 = vrcp.pop %v1703
    %v1720 = vmul.f32 %v1680, %v1719
    %v1721 = vrcp.pop %v1706
    %v1722 = vmul.f32 %v1682, %v1721
    %v1723 = vsel %vm1634, %v1708, 0.0
    %v1724 = vrot.slane %v1723, 4
    %v1725 = vadd.f32 %v1723, %v1724
    %v1726 = vrot.slane %v1725, 2
    %v1727 = vadd.f32 %v1725, %v1726
    %v1728 = vrot.slane %v1727, 1
    %v1729 = vadd.f32 %v1727, %v1728
    %v1730 = vsel %vm1634, %v1710, 0.0
    %v1731 = vrot.slane %v1730, 4
    %v1732 = vadd.f32 %v1730, %v1731
    %v1733 = vrot.slane %v1732, 2
    %v1734 = vadd.f32 %v1732, %v1733
    %v1735 = vrot.slane %v1734, 1
    %v1736 = vadd.f32 %v1734, %v1735
    %v1737 = vsel %vm1634, %v1712, 0.0
    %v1738 = vrot.slane %v1737, 4
    %v1739 = vadd.f32 %v1737, %v1738
    %v1740 = vrot.slane %v1739, 2
    %v1741 = vadd.f32 %v1739, %v1740
    %v1742 = vrot.slane %v1741, 1
    %v1743 = vadd.f32 %v1741, %v1742
    %v1744 = vsel %vm1634, %v1714, 0.0
    %v1745 = vrot.slane %v1744, 4
    %v1746 = vadd.f32 %v1744, %v1745
    %v1747 = vrot.slane %v1746, 2
    %v1748 = vadd.f32 %v1746, %v1747
    %v1749 = vrot.slane %v1748, 1
    %v1750 = vadd.f32 %v1748, %v1749
    %v1751 = vsel %vm1634, %v1716, 0.0
    %v1752 = vrot.slane %v1751, 4
    %v1753 = vadd.f32 %v1751, %v1752
    %v1754 = vrot.slane %v1753, 2
    %v1755 = vadd.f32 %v1753, %v1754
    %v1756 = vrot.slane %v1755, 1
    %v1757 = vadd.f32 %v1755, %v1756
    %v1758 = vsel %vm1634, %v1718, 0.0
    %v1759 = vrot.slane %v1758, 4
    %v1760 = vadd.f32 %v1758, %v1759
    %v1761 = vrot.slane %v1760, 2
    %v1762 = vadd.f32 %v1760, %v1761
    %v1763 = vrot.slane %v1762, 1
    %v1764 = vadd.f32 %v1762, %v1763
    %v1765 = vsel %vm1634, %v1720, 0.0
    %v1766 = vrot.slane %v1765, 4
    %v1767 = vadd.f32 %v1765, %v1766
    %v1768 = vrot.slane %v1767, 2
    %v1769 = vadd.f32 %v1767, %v1768
    %v1770 = vrot.slane %v1769, 1
    %v1771 = vadd.f32 %v1769, %v1770
    %v1772 = vsel %vm1634, %v1722, 0.0
    %v1773 = vrot.slane %v1772, 4
    %v1774 = vadd.f32 %v1772, %v1773
    %v1775 = vrot.slane %v1774, 2
    %v1776 = vadd.f32 %v1774, %v1775
    %v1777 = vrot.slane %v1776, 1
    %v1778 = vadd.f32 %v1776, %v1777
    %1780 = vbcast.lane.b32.xlu0 %v1729, 256
    %v1781 = vpop.permute.xlu0 %1780
    %1783 = vbcast.lane.b32.xlu0 %v1736, 256
    %v1784 = vpop.permute.xlu0 %1783
    %1786 = vbcast.lane.b32.xlu0 %v1743, 256
    %v1787 = vpop.permute.xlu0 %1786
    %1789 = vbcast.lane.b32.xlu0 %v1750, 256
    %v1790 = vpop.permute.xlu0 %1789
    %1792 = vbcast.lane.b32.xlu0 %v1757, 256
    %v1793 = vpop.permute.xlu0 %1792
    %1795 = vbcast.lane.b32.xlu0 %v1764, 256
    %v1796 = vpop.permute.xlu0 %1795
    %1798 = vbcast.lane.b32.xlu0 %v1771, 256
    %v1799 = vpop.permute.xlu0 %1798
    %1801 = vbcast.lane.b32.xlu0 %v1778, 256
    %v1802 = vpop.permute.xlu0 %1801
    %v1803 = vmul.f32 %v1781, %v713
    %v1804 = vmul.f32 %v1784, %v714
    %v1805 = vmul.f32 %v1787, %v715
    %v1806 = vmul.f32 %v1790, %v716
    %v1807 = vmul.f32 %v1793, %v717
    %v1808 = vmul.f32 %v1796, %v718
    %v1809 = vmul.f32 %v1799, %v719
    %v1810 = vmul.f32 %v1802, %v720
    %v1811 = vsel %vm166, %v1803, 0.0
    %v1812 = vrot.slane %v1811, 4
    %v1813 = vadd.f32 %v1811, %v1812
    %v1814 = vrot.slane %v1813, 2
    %v1815 = vadd.f32 %v1813, %v1814
    %v1816 = vrot.slane %v1815, 1
    %v1817 = vadd.f32 %v1815, %v1816
    %v1818 = vsel %vm166, %v1804, 0.0
    %v1819 = vrot.slane %v1818, 4
    %v1820 = vadd.f32 %v1818, %v1819
    %v1821 = vrot.slane %v1820, 2
    %v1822 = vadd.f32 %v1820, %v1821
    %v1823 = vrot.slane %v1822, 1
    %v1824 = vadd.f32 %v1822, %v1823
    %v1825 = vsel %vm166, %v1805, 0.0
    %v1826 = vrot.slane %v1825, 4
    %v1827 = vadd.f32 %v1825, %v1826
    %v1828 = vrot.slane %v1827, 2
    %v1829 = vadd.f32 %v1827, %v1828
    %v1830 = vrot.slane %v1829, 1
    %v1831 = vadd.f32 %v1829, %v1830
    %v1832 = vsel %vm166, %v1806, 0.0
    %v1833 = vrot.slane %v1832, 4
    %v1834 = vadd.f32 %v1832, %v1833
    %v1835 = vrot.slane %v1834, 2
    %v1836 = vadd.f32 %v1834, %v1835
    %v1837 = vrot.slane %v1836, 1
    %v1838 = vadd.f32 %v1836, %v1837
    %v1839 = vsel %vm166, %v1807, 0.0
    %v1840 = vrot.slane %v1839, 4
    %v1841 = vadd.f32 %v1839, %v1840
    %v1842 = vrot.slane %v1841, 2
    %v1843 = vadd.f32 %v1841, %v1842
    %v1844 = vrot.slane %v1843, 1
    %v1845 = vadd.f32 %v1843, %v1844
    %v1846 = vsel %vm166, %v1808, 0.0
    %v1847 = vrot.slane %v1846, 4
    %v1848 = vadd.f32 %v1846, %v1847
    %v1849 = vrot.slane %v1848, 2
    %v1850 = vadd.f32 %v1848, %v1849
    %v1851 = vrot.slane %v1850, 1
    %v1852 = vadd.f32 %v1850, %v1851
    %v1853 = vsel %vm166, %v1809, 0.0
    %v1854 = vrot.slane %v1853, 4
    %v1855 = vadd.f32 %v1853, %v1854
    %v1856 = vrot.slane %v1855, 2
    %v1857 = vadd.f32 %v1855, %v1856
    %v1858 = vrot.slane %v1857, 1
    %v1859 = vadd.f32 %v1857, %v1858
    %v1860 = vsel %vm166, %v1810, 0.0
    %v1861 = vrot.slane %v1860, 4
    %v1862 = vadd.f32 %v1860, %v1861
    %v1863 = vrot.slane %v1862, 2
    %v1864 = vadd.f32 %v1862, %v1863
    %v1865 = vrot.slane %v1864, 1
    %v1866 = vadd.f32 %v1864, %v1865
    %vm1875 = vcmask 1041409
    %v1876 = vsel %vm1875, %v1824, %v1817
    %vm1877 = vcmask 1042434
    %v1878 = vsel %vm1877, %v1831, %v1876
    %vm1879 = vcmask 1043459
    %v1880 = vsel %vm1879, %v1838, %v1878
    %vm1881 = vcmask 1044484
    %v1882 = vsel %vm1881, %v1845, %v1880
    %vm1883 = vcmask 1045509
    %v1884 = vsel %vm1883, %v1852, %v1882
    %vm1885 = vcmask 1046534
    %v1886 = vsel %vm1885, %v1859, %v1884
    %vm1887 = vcmask 1047559
    %v1888 = vsel %vm1887, %v1866, %v1886
    %1890 = vst.msk [vmem:[#allocation19] sm:$0xff] %vm166, %v1888
    // Predicated region
    $region81: #{tpu_custom_call.1} parent=1 // pred_check
      _
    $region82: #{tpu_custom_call.1} parent=1 // pred_check_branch
      %1892 = sbr.rel (0) target = $region84
    $region83: #{tpu_custom_call.1} parent=1 // pred_region
      %s1894 = ssub.s32 128, 128
      %1895 = vsyncadd [#allocation6], %s1894
      %s1897 = sshll.u32 [#allocation19], 4
      %s1898 = int_to_ptr.vmem [resolvable:$true] %s1897
      %1900 = dma.vmem_to_hbm [thread:$0]  %s1898, 128, %s9, [#allocation6]
    $region84: #{tpu_custom_call.1} parent=1 // pred_fallthru
      _
    // Predicated region
    $region85: #{tpu_custom_call.1} parent=1 // pred_check
      _
    $region86: #{tpu_custom_call.1} parent=1 // pred_check_branch
      %1902 = sbr.rel (0) target = $region88
    $region87: #{tpu_custom_call.1} parent=1 // pred_region
      %1903 = dma.done [#allocation6], 128
    $region88: #{tpu_custom_call.1} parent=1 // pred_fallthru
      _
    %1904 = vsyncpa [#allocation5], 1
    %1905 = vsyncpa [#allocation8], 1
    %1906 = vsyncpa [#allocation11], 1
    %1907 = vsyncpa [#allocation14], 1
    %1908 = vsyncpa [#allocation17], 1
    %1909 = vsyncpa [#allocation6], 1

</llo_original>
